<compile_context>
chip_gen: v5e
topology: v5e:2x2
jax: 0.10.0
libtpu: 0.0.40
codegen_flags: <defaults>
</compile_context>

<pallas_src>
import functools

import jax
import jax.numpy as jnp
from jax.experimental import pallas as pl
from jax.experimental.pallas import tpu as pltpu


# ---------------------------------------------------------------------------
# Fused Pallas kernel: 3x GCN block + row-tiled GAT block + mean-pool + MLP head
# ---------------------------------------------------------------------------

def fused_graph_encoder_kernel(
    adj_hbm,                       # (N, N) bf16 in HBM (pl.ANY)  D^-1/2 (A+I) D^-1/2; also GAT mask (>0)
    x_ref,                         # (N, Hp) f32
    w1_ref, g1_ref, be1_ref,       # GCN layer 1: (Hp,Hp) bf16, (1,Hp) f32 gamma/beta
    w2_ref, g2_ref, be2_ref,       # GCN layer 2
    w3_ref, g3_ref, be3_ref,       # GCN layer 3
    wa_ref, asrc_ref, adst_ref,    # GAT: (Hp,Hp) bf16, (1,Hp) f32, (1,Hp) f32
    ga_ref, ba_ref,                # GAT BN gamma/beta (1,Hp) f32
    pool_ref,                      # (G, N) bf16  row-normalized mean-pool matrix
    mw1_ref, mb1_ref,              # MLP: (Hp,NHp) bf16, (1,NHp) f32
    mw2_ref, mb2_ref,
    mw3_ref, mb3_ref,
    mw4_ref, mb4_ref,              # (NHp,NOp) bf16, (1,NOp) f32
    out_ref,                       # (G, NOp) f32
    adj_vmem,                      # scratch (N, N) bf16
    adj_sem,                       # scratch DMA semaphore
    a_d_sc,                        # scratch (N, 1) f32  (dst attention logits)
    o_sc,                          # scratch (N, Hp) f32 (GAT output accumulator)
    *, tq, n_chunks, softmax_bf16,
):
    # Kick the big adjacency DMA immediately; overlap it with the first X @ W.
    adj_cp = pltpu.make_async_copy(adj_hbm, adj_vmem, adj_sem)
    adj_cp.start()

    x = x_ref[...]                 # (N, Hp) f32

    def bn_relu_res(h, gamma, beta, x_res):
        # BatchNorm1d, training-mode batch stats over the node axis, single pass:
        # var = E[h^2] - mean^2 (biased), eps = 1e-5.
        mean = jnp.mean(h, axis=0, keepdims=True)
        ex2 = jnp.mean(h * h, axis=0, keepdims=True)
        var = jnp.maximum(ex2 - mean * mean, 0.0)
        hn = (h - mean) * jax.lax.rsqrt(var + 1e-5) * gamma + beta
        return jnp.maximum(hn, 0.0) + x_res

    # ---- GCN block 1: X @ W overlapped with the adjacency DMA ----
    h = jnp.dot(x.astype(jnp.bfloat16), w1_ref[...],
                preferred_element_type=jnp.float32)
    adj_cp.wait()
    adj = adj_vmem[...]            # bf16, resident for all 4 graph layers
    h = jnp.dot(adj, h.astype(jnp.bfloat16), preferred_element_type=jnp.float32)
    x = bn_relu_res(h, g1_ref[...], be1_ref[...], x)

    def gcn_block(x_in, w_ref, g_ref, b_ref):
        # Conv bias dropped: cancels exactly in (h - mean) of the following BN.
        hh = jnp.dot(x_in.astype(jnp.bfloat16), w_ref[...],
                     preferred_element_type=jnp.float32)
        hh = jnp.dot(adj, hh.astype(jnp.bfloat16),
                     preferred_element_type=jnp.float32)
        return bn_relu_res(hh, g_ref[...], b_ref[...], x_in)

    x = gcn_block(x, w2_ref, g2_ref, be2_ref)
    x = gcn_block(x, w3_ref, g3_ref, be3_ref)

    # ---- GAT, 1 head, flash-style row tiling over dst rows (bias dropped) ----
    h = jnp.dot(x.astype(jnp.bfloat16), wa_ref[...],
                preferred_element_type=jnp.float32)                  # (N, Hp) f32
    h_b = h.astype(jnp.bfloat16)                                     # reused per chunk
    # Attention "matvecs" as VPU mul + XLU reduce (no (Hp,1) MXU pushes).
    a_d_sc[...] = jnp.sum(h * adst_ref[...], axis=-1, keepdims=True)  # (N, 1)
    a_s_row = jnp.transpose(jnp.sum(h * asrc_ref[...], axis=-1, keepdims=True))  # (1, N)

    @pl.loop(0, n_chunks)
    def _(c):
        start = pl.multiple_of(c * tq, tq)
        e = a_d_sc[pl.ds(start, tq), :] + a_s_row                    # (tq, N) f32
        e = jnp.maximum(e, 0.2 * e)                                  # LeakyReLU(0.2), 1 vmax
        e = jnp.where(adj_vmem[pl.ds(start, tq), :] > 0, e, -1e30)   # edges + self loops
        z = e - jnp.max(e, axis=1, keepdims=True)
        if softmax_bf16:
            # bf16 exp / alpha on v6e/v7x (bf16 EUP+VPU); max & denom stay f32.
            p = jnp.exp(z.astype(jnp.bfloat16))
            denom = jnp.sum(p.astype(jnp.float32), axis=1, keepdims=True)
            alpha = p * pl.reciprocal(denom, approx=True).astype(jnp.bfloat16)
        else:
            p = jnp.exp(z)                                           # already 0 where masked
            alpha = (p * pl.reciprocal(jnp.sum(p, axis=1, keepdims=True),
                                       approx=True)).astype(jnp.bfloat16)
        o_sc[pl.ds(start, tq), :] = jnp.dot(alpha, h_b,
                                            preferred_element_type=jnp.float32)

    x = bn_relu_res(o_sc[...], ga_ref[...], ba_ref[...], x)

    # ---- global mean pool (bf16 matmul) + 4-layer MLP head ----
    g = jnp.dot(pool_ref[...], x.astype(jnp.bfloat16),
                preferred_element_type=jnp.float32)                  # (G, Hp)
    h1 = jnp.maximum(jnp.dot(g.astype(jnp.bfloat16), mw1_ref[...],
                             preferred_element_type=jnp.float32) + mb1_ref[...], 0.0)
    h2 = jnp.maximum(jnp.dot(h1.astype(jnp.bfloat16), mw2_ref[...],
                             preferred_element_type=jnp.float32) + mb2_ref[...], 0.0)
    h3 = jnp.maximum(jnp.dot(h2.astype(jnp.bfloat16), mw3_ref[...],
                             preferred_element_type=jnp.float32) + mb3_ref[...], 0.0)
    out_ref[...] = jnp.dot(h3.astype(jnp.bfloat16), mw4_ref[...],
                           preferred_element_type=jnp.float32) + mb4_ref[...]


# ---------------------------------------------------------------------------
# Wrapper: dense graph matrices, lane padding, single fused pallas_call
# ---------------------------------------------------------------------------

def _round_up(v, m):
    return -(-v // m) * m


def _pick_row_tile(n):
    # Largest dst-row chunk (<=256) dividing N; fallback = whole thing.
    for c in (256, 128, 64, 32, 16, 8):
        if n % c == 0:
            return c
    return n


@functools.lru_cache(maxsize=None)
def _tpu_config():
    # Generation-aware VMEM limit + bf16-softmax flag (trace-time hardware query).
    try:
        kind = jax.devices()[0].device_kind.lower()
    except Exception:
        kind = ""
    phys = None
    try:
        phys = int(pltpu.get_tpu_info().vmem_capacity_bytes)
    except Exception:
        phys = None
    if not phys or phys <= 0:
        if any(t in kind for t in ("v2", "v3", "v4", "v5", "v6")):
            phys = 128 * 1024 * 1024
        else:
            phys = 64 * 1024 * 1024          # v7x / unknown: be conservative
    vmem_limit = min(phys * 4 // 5, 100 * 1024 * 1024)
    # bf16 EUP/VPU only on v6e/v7x; on older gens bf16 exp just adds casts.
    softmax_bf16 = not any(t in kind for t in ("v2", "v3", "v4", "v5"))
    return int(vmem_limit), bool(softmax_bf16)


@functools.partial(jax.jit, static_argnames=("num_graphs", "nout"))
def graph_encoder_one_head(x, edge_index, batch, params, *, num_graphs, nout):
    N, H = x.shape
    nhid = params["w1"].shape[1]
    Hp, NHp, NOp = _round_up(H, 128), _round_up(nhid, 128), _round_up(nout, 128)
    # NOTE (v6e/v7x): with Hp == 128 the 256-wide MXU is half filled; if the model's
    # hidden size is tunable, Hp >= 256 improves MXU utilization.

    # Fused dense normalized adjacency: one scatter (sym + self loops, dedup via set),
    # one degree reduce, one scale+cast pass.
    src, dst = edge_index[0], edge_index[1]
    ar = jnp.arange(N, dtype=edge_index.dtype)
    rows = jnp.concatenate([dst, src, ar])
    cols = jnp.concatenate([src, dst, ar])
    A_hat = jnp.zeros((N, N), jnp.float32).at[rows, cols].set(1.0)
    dinv = jax.lax.rsqrt(jnp.sum(A_hat, axis=1))
    norm_adj = ((A_hat * dinv[:, None]) * dinv[None, :]).astype(jnp.bfloat16)

    # Mean-pooling matrix (G, N), bf16 so the pool matmul stays on the bf16 MXU path.
    onehot = (batch[None, :] == jnp.arange(num_graphs)[:, None]).astype(jnp.float32)
    counts = jnp.maximum(jnp.sum(onehot, axis=1, keepdims=True), 1.0)
    pool_mat = (onehot / counts).astype(jnp.bfloat16)

    # Lane-dense zero padding of feature dims (padded columns provably stay zero).
    def padw(w, rp, cp):          # (in, out) matmul weight -> padded bf16
        return jnp.pad(w, ((0, rp - w.shape[0]), (0, cp - w.shape[1]))).astype(jnp.bfloat16)

    def padr(v, cp):              # (1, C) row param -> padded f32
        return jnp.pad(v, ((0, 0), (0, cp - v.shape[1])))

    xp = jnp.pad(x, ((0, 0), (0, Hp - H)))

    args = (
        norm_adj, xp,
        padw(params["conv1_w"], Hp, Hp), padr(params["bn1_g"], Hp), padr(params["bn1_b"], Hp),
        padw(params["conv2_w"], Hp, Hp), padr(params["bn2_g"], Hp), padr(params["bn2_b"], Hp),
        padw(params["conv3_w"], Hp, Hp), padr(params["bn3_g"], Hp), padr(params["bn3_b"], Hp),
        padw(params["att_w"], Hp, Hp),
        padr(params["att_asrc"], Hp), padr(params["att_adst"], Hp),
        padr(params["bn_att_g"], Hp), padr(params["bn_att_b"], Hp),
        pool_mat,
        padw(params["w1"], Hp, NHp), padr(params["b1"], NHp),
        padw(params["w2"], NHp, NHp), padr(params["b2"], NHp),
        padw(params["w3"], NHp, NHp), padr(params["b3"], NHp),
        padw(params["w4"], NHp, NOp), padr(params["b4"], NOp),
    )

    vmem_limit, softmax_bf16 = _tpu_config()
    tq = _pick_row_tile(N)
    n_chunks = N // tq

    kernel = functools.partial(fused_graph_encoder_kernel,
                               tq=tq, n_chunks=n_chunks, softmax_bf16=softmax_bf16)

    vspec = pl.BlockSpec(memory_space=pltpu.MemorySpace.VMEM)   # full-array, VMEM-resident
    anyspec = pl.BlockSpec(memory_space=pl.ANY)                 # raw HBM ref, manual DMA

    out_padded = pl.pallas_call(
        kernel,
        out_shape=jax.ShapeDtypeStruct((num_graphs, NOp), jnp.float32),
        in_specs=[anyspec] + [vspec] * (len(args) - 1),
        out_specs=vspec,
        scratch_shapes=[
            pltpu.VMEM((N, N), jnp.bfloat16),     # adjacency landing buffer
            pltpu.SemaphoreType.DMA(()),          # its DMA semaphore
            pltpu.VMEM((N, 1), jnp.float32),      # dst attention logits
            pltpu.VMEM((N, Hp), jnp.float32),     # GAT output accumulator
        ],
        compiler_params=pltpu.CompilerParams(vmem_limit_bytes=vmem_limit),
    )(*args)
    return out_padded[:, :nout]


# ---------------------------------------------------------------------------
# Deterministic parameter construction
# ---------------------------------------------------------------------------

def make_params(key, num_node_features, graph_hidden_channels, nhid, nout):
    H = graph_hidden_channels
    assert num_node_features == H, "residual connections require F_in == H"
    ks = jax.random.split(key, 16)
    n = lambda k, shp: (jax.random.normal(k, shp, jnp.float32) * 0.1)
    # Conv / GAT biases are omitted: they cancel exactly inside the following
    # training-mode BatchNorm.
    return {
        "conv1_w": n(ks[0], (num_node_features, H)),
        "conv2_w": n(ks[1], (H, H)),
        "conv3_w": n(ks[2], (H, H)),
        "bn1_g": jnp.ones((1, H), jnp.float32), "bn1_b": jnp.zeros((1, H), jnp.float32),
        "bn2_g": jnp.ones((1, H), jnp.float32), "bn2_b": jnp.zeros((1, H), jnp.float32),
        "bn3_g": jnp.ones((1, H), jnp.float32), "bn3_b": jnp.zeros((1, H), jnp.float32),
        "att_w": n(ks[3], (H, H)),
        "att_asrc": n(ks[4], (1, H)),
        "att_adst": n(ks[5], (1, H)),
        "bn_att_g": jnp.ones((1, H), jnp.float32), "bn_att_b": jnp.zeros((1, H), jnp.float32),
        # Linear layers stored as (in, out) so y = x @ W + b (== PyTorch x @ W.T + b).
        "w1": n(ks[6], (H, nhid)), "b1": jnp.zeros((1, nhid), jnp.float32),
        "w2": n(ks[7], (nhid, nhid)), "b2": jnp.zeros((1, nhid), jnp.float32),
        "w3": n(ks[8], (nhid, nhid)), "b3": jnp.zeros((1, nhid), jnp.float32),
        "w4": n(ks[9], (nhid, nout)), "b4": jnp.zeros((1, nout), jnp.float32),
    }


if __name__ == "__main__":
    # Small synthetic graph batch: 2 graphs, 8 nodes each, H = 32 node features.
    N, H, NHID, NOUT, G, E = 16, 32, 32, 16, 2, 40

    key = jax.random.PRNGKey(0)
    k_x, k_src, k_dst, k_par = jax.random.split(key, 4)

    x = jax.random.normal(k_x, (N, H), jnp.float32)
    src = jax.random.randint(k_src, (E,), 0, N, jnp.int32)
    dst = jax.random.randint(k_dst, (E,), 0, N, jnp.int32)
    edge_index = jnp.stack([src, dst], axis=0)                 # [2, E]
    batch = jnp.concatenate([jnp.zeros(8, jnp.int32), jnp.ones(8, jnp.int32)])

    params = make_params(k_par, num_node_features=H, graph_hidden_channels=H,
                         nhid=NHID, nout=NOUT)

    out = graph_encoder_one_head(x, edge_index, batch, params,
                                 num_graphs=G, nout=NOUT)
    out = jax.block_until_ready(out)
    assert out.shape == (G, NOUT)
    assert bool(jnp.all(jnp.isfinite(out)))
    print("KERNEL_OK")
</pallas_src>

<mosaic_0001>
module attributes {stable_mosaic.version = 11 : i64} {
  func.func @fused_graph_encoder_kernel(%arg0: memref<16x16xbf16, #tpu.memory_space<any>>, %arg1: memref<16x128xf32, #tpu.memory_space<vmem>>, %arg2: memref<128x128xbf16, #tpu.memory_space<vmem>>, %arg3: memref<1x128xf32, #tpu.memory_space<vmem>>, %arg4: memref<1x128xf32, #tpu.memory_space<vmem>>, %arg5: memref<128x128xbf16, #tpu.memory_space<vmem>>, %arg6: memref<1x128xf32, #tpu.memory_space<vmem>>, %arg7: memref<1x128xf32, #tpu.memory_space<vmem>>, %arg8: memref<128x128xbf16, #tpu.memory_space<vmem>>, %arg9: memref<1x128xf32, #tpu.memory_space<vmem>>, %arg10: memref<1x128xf32, #tpu.memory_space<vmem>>, %arg11: memref<128x128xbf16, #tpu.memory_space<vmem>>, %arg12: memref<1x128xf32, #tpu.memory_space<vmem>>, %arg13: memref<1x128xf32, #tpu.memory_space<vmem>>, %arg14: memref<1x128xf32, #tpu.memory_space<vmem>>, %arg15: memref<1x128xf32, #tpu.memory_space<vmem>>, %arg16: memref<2x16xbf16, #tpu.memory_space<vmem>>, %arg17: memref<128x128xbf16, #tpu.memory_space<vmem>>, %arg18: memref<1x128xf32, #tpu.memory_space<vmem>>, %arg19: memref<128x128xbf16, #tpu.memory_space<vmem>>, %arg20: memref<1x128xf32, #tpu.memory_space<vmem>>, %arg21: memref<128x128xbf16, #tpu.memory_space<vmem>>, %arg22: memref<1x128xf32, #tpu.memory_space<vmem>>, %arg23: memref<128x128xbf16, #tpu.memory_space<vmem>>, %arg24: memref<1x128xf32, #tpu.memory_space<vmem>>, %arg25: memref<2x128xf32, #tpu.memory_space<vmem>>, %arg26: memref<16x16xbf16, #tpu.memory_space<vmem>>, %arg27: memref<!tpu.dma_semaphore, #tpu.memory_space<semaphore_mem>>, %arg28: memref<16x1xf32, #tpu.memory_space<vmem>>, %arg29: memref<16x128xf32, #tpu.memory_space<vmem>>) attributes {dimension_semantics = [], scalar_prefetch = 0 : i64, scratch_operands = 4 : i64, tpu.core_type = #tpu.core_type<tc>} {
    tpu.enqueue_dma source(%arg0 : memref<16x16xbf16, #tpu.memory_space<any>>) target(%arg26 : memref<16x16xbf16, #tpu.memory_space<vmem>>) target_semaphore(%arg27 : memref<!tpu.dma_semaphore, #tpu.memory_space<semaphore_mem>>)
    %c0 = arith.constant 0 : index
    %c0_0 = arith.constant 0 : index
    %0 = vector.load %arg1[%c0, %c0_0] : memref<16x128xf32, #tpu.memory_space<vmem>>, vector<16x128xf32>
    %1 = arith.truncf %0 : vector<16x128xf32> to vector<16x128xbf16>
    %c0_1 = arith.constant 0 : index
    %c0_2 = arith.constant 0 : index
    %2 = vector.load %arg2[%c0_1, %c0_2] : memref<128x128xbf16, #tpu.memory_space<vmem>>, vector<128x128xbf16>
    %cst = arith.constant dense<0.000000e+00> : vector<16x128xf32>
    %3 = tpu.matmul %1, %2, %cst {dimension_numbers = #tpu.dot_dimension_numbers<[1], [0], [0], [1], [0, 0, 1, 1], [], []>} : vector<16x128xbf16>, vector<128x128xbf16>, vector<16x128xf32> -> vector<16x128xf32>
    tpu.wait_dma2 semaphore(%arg27 : memref<!tpu.dma_semaphore, #tpu.memory_space<semaphore_mem>>) src(%arg0 : memref<16x16xbf16, #tpu.memory_space<any>>) dst(%arg26 : memref<16x16xbf16, #tpu.memory_space<vmem>>)
    %c0_3 = arith.constant 0 : index
    %c0_4 = arith.constant 0 : index
    %4 = vector.load %arg26[%c0_3, %c0_4] : memref<16x16xbf16, #tpu.memory_space<vmem>>, vector<16x16xbf16>
    %5 = arith.truncf %3 : vector<16x128xf32> to vector<16x128xbf16>
    %cst_5 = arith.constant dense<0.000000e+00> : vector<16x128xf32>
    %6 = tpu.matmul %4, %5, %cst_5 {dimension_numbers = #tpu.dot_dimension_numbers<[1], [0], [0], [1], [0, 0, 1, 1], [], []>} : vector<16x16xbf16>, vector<16x128xbf16>, vector<16x128xf32> -> vector<16x128xf32>
    %c0_6 = arith.constant 0 : index
    %c0_7 = arith.constant 0 : index
    %7 = vector.load %arg3[%c0_6, %c0_7] : memref<1x128xf32, #tpu.memory_space<vmem>>, vector<1x128xf32>
    %c0_8 = arith.constant 0 : index
    %c0_9 = arith.constant 0 : index
    %8 = vector.load %arg4[%c0_8, %c0_9] : memref<1x128xf32, #tpu.memory_space<vmem>>, vector<1x128xf32>
    %cst_10 = arith.constant dense<0.000000e+00> : vector<128xf32>
    %9 = vector.multi_reduction <add>, %6, %cst_10 [0] : vector<16x128xf32> to vector<128xf32>
    %10 = vector.shape_cast %9 : vector<128xf32> to vector<1x128xf32>
    %cst_11 = arith.constant 1.600000e+01 : f32
    %11 = vector.broadcast %cst_11 : f32 to vector<1x128xf32>
    %12 = arith.divf %10, %11 : vector<1x128xf32>
    %13 = arith.mulf %6, %6 : vector<16x128xf32>
    %cst_12 = arith.constant dense<0.000000e+00> : vector<128xf32>
    %14 = vector.multi_reduction <add>, %13, %cst_12 [0] : vector<16x128xf32> to vector<128xf32>
    %15 = vector.shape_cast %14 : vector<128xf32> to vector<1x128xf32>
    %cst_13 = arith.constant 1.600000e+01 : f32
    %16 = vector.broadcast %cst_13 : f32 to vector<1x128xf32>
    %17 = arith.divf %15, %16 : vector<1x128xf32>
    %18 = arith.mulf %12, %12 : vector<1x128xf32>
    %19 = arith.subf %17, %18 : vector<1x128xf32>
    %cst_14 = arith.constant 0.000000e+00 : f32
    %20 = vector.broadcast %cst_14 : f32 to vector<1x128xf32>
    %21 = arith.maximumf %19, %20 : vector<1x128xf32>
    %22 = vector.broadcast %12 : vector<1x128xf32> to vector<16x128xf32>
    %23 = arith.subf %6, %22 : vector<16x128xf32>
    %cst_15 = arith.constant 9.99999974E-6 : f32
    %24 = vector.broadcast %cst_15 : f32 to vector<1x128xf32>
    %25 = arith.addf %21, %24 : vector<1x128xf32>
    %26 = math.rsqrt %25 : vector<1x128xf32>
    %27 = vector.broadcast %26 : vector<1x128xf32> to vector<16x128xf32>
    %28 = arith.mulf %23, %27 : vector<16x128xf32>
    %29 = vector.broadcast %7 : vector<1x128xf32> to vector<16x128xf32>
    %30 = arith.mulf %28, %29 : vector<16x128xf32>
    %31 = vector.broadcast %8 : vector<1x128xf32> to vector<16x128xf32>
    %32 = arith.addf %30, %31 : vector<16x128xf32>
    %cst_16 = arith.constant 0.000000e+00 : f32
    %33 = vector.broadcast %cst_16 : f32 to vector<16x128xf32>
    %34 = arith.maximumf %32, %33 : vector<16x128xf32>
    %35 = arith.addf %34, %0 : vector<16x128xf32>
    %36 = arith.truncf %35 : vector<16x128xf32> to vector<16x128xbf16>
    %c0_17 = arith.constant 0 : index
    %c0_18 = arith.constant 0 : index
    %37 = vector.load %arg5[%c0_17, %c0_18] : memref<128x128xbf16, #tpu.memory_space<vmem>>, vector<128x128xbf16>
    %cst_19 = arith.constant dense<0.000000e+00> : vector<16x128xf32>
    %38 = tpu.matmul %36, %37, %cst_19 {dimension_numbers = #tpu.dot_dimension_numbers<[1], [0], [0], [1], [0, 0, 1, 1], [], []>} : vector<16x128xbf16>, vector<128x128xbf16>, vector<16x128xf32> -> vector<16x128xf32>
    %39 = arith.truncf %38 : vector<16x128xf32> to vector<16x128xbf16>
    %cst_20 = arith.constant dense<0.000000e+00> : vector<16x128xf32>
    %40 = tpu.matmul %4, %39, %cst_20 {dimension_numbers = #tpu.dot_dimension_numbers<[1], [0], [0], [1], [0, 0, 1, 1], [], []>} : vector<16x16xbf16>, vector<16x128xbf16>, vector<16x128xf32> -> vector<16x128xf32>
    %c0_21 = arith.constant 0 : index
    %c0_22 = arith.constant 0 : index
    %41 = vector.load %arg6[%c0_21, %c0_22] : memref<1x128xf32, #tpu.memory_space<vmem>>, vector<1x128xf32>
    %c0_23 = arith.constant 0 : index
    %c0_24 = arith.constant 0 : index
    %42 = vector.load %arg7[%c0_23, %c0_24] : memref<1x128xf32, #tpu.memory_space<vmem>>, vector<1x128xf32>
    %cst_25 = arith.constant dense<0.000000e+00> : vector<128xf32>
    %43 = vector.multi_reduction <add>, %40, %cst_25 [0] : vector<16x128xf32> to vector<128xf32>
    %44 = vector.shape_cast %43 : vector<128xf32> to vector<1x128xf32>
    %cst_26 = arith.constant 1.600000e+01 : f32
    %45 = vector.broadcast %cst_26 : f32 to vector<1x128xf32>
    %46 = arith.divf %44, %45 : vector<1x128xf32>
    %47 = arith.mulf %40, %40 : vector<16x128xf32>
    %cst_27 = arith.constant dense<0.000000e+00> : vector<128xf32>
    %48 = vector.multi_reduction <add>, %47, %cst_27 [0] : vector<16x128xf32> to vector<128xf32>
    %49 = vector.shape_cast %48 : vector<128xf32> to vector<1x128xf32>
    %cst_28 = arith.constant 1.600000e+01 : f32
    %50 = vector.broadcast %cst_28 : f32 to vector<1x128xf32>
    %51 = arith.divf %49, %50 : vector<1x128xf32>
    %52 = arith.mulf %46, %46 : vector<1x128xf32>
    %53 = arith.subf %51, %52 : vector<1x128xf32>
    %cst_29 = arith.constant 0.000000e+00 : f32
    %54 = vector.broadcast %cst_29 : f32 to vector<1x128xf32>
    %55 = arith.maximumf %53, %54 : vector<1x128xf32>
    %56 = vector.broadcast %46 : vector<1x128xf32> to vector<16x128xf32>
    %57 = arith.subf %40, %56 : vector<16x128xf32>
    %cst_30 = arith.constant 9.99999974E-6 : f32
    %58 = vector.broadcast %cst_30 : f32 to vector<1x128xf32>
    %59 = arith.addf %55, %58 : vector<1x128xf32>
    %60 = math.rsqrt %59 : vector<1x128xf32>
    %61 = vector.broadcast %60 : vector<1x128xf32> to vector<16x128xf32>
    %62 = arith.mulf %57, %61 : vector<16x128xf32>
    %63 = vector.broadcast %41 : vector<1x128xf32> to vector<16x128xf32>
    %64 = arith.mulf %62, %63 : vector<16x128xf32>
    %65 = vector.broadcast %42 : vector<1x128xf32> to vector<16x128xf32>
    %66 = arith.addf %64, %65 : vector<16x128xf32>
    %cst_31 = arith.constant 0.000000e+00 : f32
    %67 = vector.broadcast %cst_31 : f32 to vector<16x128xf32>
    %68 = arith.maximumf %66, %67 : vector<16x128xf32>
    %69 = arith.addf %68, %35 : vector<16x128xf32>
    %70 = arith.truncf %69 : vector<16x128xf32> to vector<16x128xbf16>
    %c0_32 = arith.constant 0 : index
    %c0_33 = arith.constant 0 : index
    %71 = vector.load %arg8[%c0_32, %c0_33] : memref<128x128xbf16, #tpu.memory_space<vmem>>, vector<128x128xbf16>
    %cst_34 = arith.constant dense<0.000000e+00> : vector<16x128xf32>
    %72 = tpu.matmul %70, %71, %cst_34 {dimension_numbers = #tpu.dot_dimension_numbers<[1], [0], [0], [1], [0, 0, 1, 1], [], []>} : vector<16x128xbf16>, vector<128x128xbf16>, vector<16x128xf32> -> vector<16x128xf32>
    %73 = arith.truncf %72 : vector<16x128xf32> to vector<16x128xbf16>
    %cst_35 = arith.constant dense<0.000000e+00> : vector<16x128xf32>
    %74 = tpu.matmul %4, %73, %cst_35 {dimension_numbers = #tpu.dot_dimension_numbers<[1], [0], [0], [1], [0, 0, 1, 1], [], []>} : vector<16x16xbf16>, vector<16x128xbf16>, vector<16x128xf32> -> vector<16x128xf32>
    %c0_36 = arith.constant 0 : index
    %c0_37 = arith.constant 0 : index
    %75 = vector.load %arg9[%c0_36, %c0_37] : memref<1x128xf32, #tpu.memory_space<vmem>>, vector<1x128xf32>
    %c0_38 = arith.constant 0 : index
    %c0_39 = arith.constant 0 : index
    %76 = vector.load %arg10[%c0_38, %c0_39] : memref<1x128xf32, #tpu.memory_space<vmem>>, vector<1x128xf32>
    %cst_40 = arith.constant dense<0.000000e+00> : vector<128xf32>
    %77 = vector.multi_reduction <add>, %74, %cst_40 [0] : vector<16x128xf32> to vector<128xf32>
    %78 = vector.shape_cast %77 : vector<128xf32> to vector<1x128xf32>
    %cst_41 = arith.constant 1.600000e+01 : f32
    %79 = vector.broadcast %cst_41 : f32 to vector<1x128xf32>
    %80 = arith.divf %78, %79 : vector<1x128xf32>
    %81 = arith.mulf %74, %74 : vector<16x128xf32>
    %cst_42 = arith.constant dense<0.000000e+00> : vector<128xf32>
    %82 = vector.multi_reduction <add>, %81, %cst_42 [0] : vector<16x128xf32> to vector<128xf32>
    %83 = vector.shape_cast %82 : vector<128xf32> to vector<1x128xf32>
    %cst_43 = arith.constant 1.600000e+01 : f32
    %84 = vector.broadcast %cst_43 : f32 to vector<1x128xf32>
    %85 = arith.divf %83, %84 : vector<1x128xf32>
    %86 = arith.mulf %80, %80 : vector<1x128xf32>
    %87 = arith.subf %85, %86 : vector<1x128xf32>
    %cst_44 = arith.constant 0.000000e+00 : f32
    %88 = vector.broadcast %cst_44 : f32 to vector<1x128xf32>
    %89 = arith.maximumf %87, %88 : vector<1x128xf32>
    %90 = vector.broadcast %80 : vector<1x128xf32> to vector<16x128xf32>
    %91 = arith.subf %74, %90 : vector<16x128xf32>
    %cst_45 = arith.constant 9.99999974E-6 : f32
    %92 = vector.broadcast %cst_45 : f32 to vector<1x128xf32>
    %93 = arith.addf %89, %92 : vector<1x128xf32>
    %94 = math.rsqrt %93 : vector<1x128xf32>
    %95 = vector.broadcast %94 : vector<1x128xf32> to vector<16x128xf32>
    %96 = arith.mulf %91, %95 : vector<16x128xf32>
    %97 = vector.broadcast %75 : vector<1x128xf32> to vector<16x128xf32>
    %98 = arith.mulf %96, %97 : vector<16x128xf32>
    %99 = vector.broadcast %76 : vector<1x128xf32> to vector<16x128xf32>
    %100 = arith.addf %98, %99 : vector<16x128xf32>
    %cst_46 = arith.constant 0.000000e+00 : f32
    %101 = vector.broadcast %cst_46 : f32 to vector<16x128xf32>
    %102 = arith.maximumf %100, %101 : vector<16x128xf32>
    %103 = arith.addf %102, %69 : vector<16x128xf32>
    %104 = arith.truncf %103 : vector<16x128xf32> to vector<16x128xbf16>
    %c0_47 = arith.constant 0 : index
    %c0_48 = arith.constant 0 : index
    %105 = vector.load %arg11[%c0_47, %c0_48] : memref<128x128xbf16, #tpu.memory_space<vmem>>, vector<128x128xbf16>
    %cst_49 = arith.constant dense<0.000000e+00> : vector<16x128xf32>
    %106 = tpu.matmul %104, %105, %cst_49 {dimension_numbers = #tpu.dot_dimension_numbers<[1], [0], [0], [1], [0, 0, 1, 1], [], []>} : vector<16x128xbf16>, vector<128x128xbf16>, vector<16x128xf32> -> vector<16x128xf32>
    %107 = arith.truncf %106 : vector<16x128xf32> to vector<16x128xbf16>
    %c0_50 = arith.constant 0 : index
    %c0_51 = arith.constant 0 : index
    %108 = vector.load %arg13[%c0_50, %c0_51] : memref<1x128xf32, #tpu.memory_space<vmem>>, vector<1x128xf32>
    %109 = vector.broadcast %108 : vector<1x128xf32> to vector<16x128xf32>
    %110 = arith.mulf %106, %109 : vector<16x128xf32>
    %cst_52 = arith.constant dense<0.000000e+00> : vector<16xf32>
    %111 = vector.multi_reduction <add>, %110, %cst_52 [1] : vector<16x128xf32> to vector<16xf32>
    %112 = vector.shape_cast %111 : vector<16xf32> to vector<16x1xf32>
    %c0_53 = arith.constant 0 : index
    %c0_54 = arith.constant 0 : index
    %113 = vector.load %arg28[%c0_53, %c0_54] : memref<16x1xf32, #tpu.memory_space<vmem>>, vector<16x1xf32>
    tpu.vector_store %arg28[%c0_53, %c0_54], %112 {strides = array<i32>} : memref<16x1xf32, #tpu.memory_space<vmem>>, vector<16x1xf32>,
    %c0_55 = arith.constant 0 : index
    %c0_56 = arith.constant 0 : index
    %114 = vector.load %arg12[%c0_55, %c0_56] : memref<1x128xf32, #tpu.memory_space<vmem>>, vector<1x128xf32>
    %115 = vector.broadcast %114 : vector<1x128xf32> to vector<16x128xf32>
    %116 = arith.mulf %106, %115 : vector<16x128xf32>
    %cst_57 = arith.constant dense<0.000000e+00> : vector<16xf32>
    %117 = vector.multi_reduction <add>, %116, %cst_57 [1] : vector<16x128xf32> to vector<16xf32>
    %118 = vector.shape_cast %117 : vector<16xf32> to vector<16x1xf32>
    %119 = tpu.transpose %118, [1, 0] : vector<16x1xf32> -> vector<1x16xf32>
    %c0_i32 = arith.constant 0 : i32
    %c1_i32 = arith.constant 1 : i32
    %120 = arith.muli %c0_i32, %c1_i32 : i32
    %c0_i32_58 = arith.constant 0 : i32
    %121 = arith.addi %c0_i32_58, %120 : i32
    %c16_i32 = arith.constant 16 : i32
    %122 = arith.muli %121, %c16_i32 : i32
    %123 = tpu.assume_multiple %122, 16 : i32
    %124 = arith.index_cast %123 : i32 to index
    %c0_59 = arith.constant 0 : index
    %125 = vector.load %arg28[%124, %c0_59] : memref<16x1xf32, #tpu.memory_space<vmem>>, vector<16x1xf32>
    %126 = vector.broadcast %125 : vector<16x1xf32> to vector<16x16xf32>
    %127 = vector.broadcast %119 : vector<1x16xf32> to vector<16x16xf32>
    %128 = arith.addf %126, %127 : vector<16x16xf32>
    %cst_60 = arith.constant 2.000000e-01 : f32
    %129 = vector.broadcast %cst_60 : f32 to vector<16x16xf32>
    %130 = arith.mulf %129, %128 : vector<16x16xf32>
    %131 = arith.maximumf %128, %130 : vector<16x16xf32>
    %132 = arith.index_cast %123 : i32 to index
    %c0_61 = arith.constant 0 : index
    %133 = vector.load %arg26[%132, %c0_61] : memref<16x16xbf16, #tpu.memory_space<vmem>>, vector<16x16xbf16>
    %cst_62 = arith.constant 0.000000e+00 : bf16
    %134 = vector.broadcast %cst_62 : bf16 to vector<16x16xbf16>
    %135 = arith.cmpf ogt, %133, %134 : vector<16x16xbf16>
    %cst_63 = arith.constant -1.000000e+30 : f32
    %136 = vector.broadcast %cst_63 : f32 to vector<16x16xf32>
    %137 = arith.select %135, %131, %136 : vector<16x16xi1>, vector<16x16xf32>
    %cst_64 = arith.constant dense<0xFF800000> : vector<16xf32>
    %138 = vector.multi_reduction <maximumf>, %137, %cst_64 [1] : vector<16x16xf32> to vector<16xf32>
    %139 = vector.shape_cast %138 : vector<16xf32> to vector<16x1xf32>
    %140 = vector.broadcast %139 : vector<16x1xf32> to vector<16x16xf32>
    %141 = arith.subf %137, %140 : vector<16x16xf32>
    %142 = arith.truncf %141 : vector<16x16xf32> to vector<16x16xbf16>
    %143 = math.exp %142 : vector<16x16xbf16>
    %144 = arith.extf %143 : vector<16x16xbf16> to vector<16x16xf32>
    %cst_65 = arith.constant dense<0.000000e+00> : vector<16xf32>
    %145 = vector.multi_reduction <add>, %144, %cst_65 [1] : vector<16x16xf32> to vector<16xf32>
    %146 = vector.shape_cast %145 : vector<16xf32> to vector<16x1xf32>
    %147 = tpu.reciprocal %146 {approx = true} : vector<16x1xf32> -> vector<16x1xf32>
    %148 = arith.truncf %147 : vector<16x1xf32> to vector<16x1xbf16>
    %149 = vector.broadcast %148 : vector<16x1xbf16> to vector<16x16xbf16>
    %150 = arith.mulf %143, %149 : vector<16x16xbf16>
    %cst_66 = arith.constant dense<0.000000e+00> : vector<16x128xf32>
    %151 = tpu.matmul %150, %107, %cst_66 {dimension_numbers = #tpu.dot_dimension_numbers<[1], [0], [0], [1], [0, 0, 1, 1], [], []>} : vector<16x16xbf16>, vector<16x128xbf16>, vector<16x128xf32> -> vector<16x128xf32>
    %152 = arith.index_cast %123 : i32 to index
    %c0_67 = arith.constant 0 : index
    %153 = vector.load %arg29[%152, %c0_67] : memref<16x128xf32, #tpu.memory_space<vmem>>, vector<16x128xf32>
    tpu.vector_store %arg29[%152, %c0_67], %151 {strides = array<i32>} : memref<16x128xf32, #tpu.memory_space<vmem>>, vector<16x128xf32>,
    %c1_i32_68 = arith.constant 1 : i32
    %c0_69 = arith.constant 0 : index
    %c0_70 = arith.constant 0 : index
    %154 = vector.load %arg29[%c0_69, %c0_70] : memref<16x128xf32, #tpu.memory_space<vmem>>, vector<16x128xf32>
    %c0_71 = arith.constant 0 : index
    %c0_72 = arith.constant 0 : index
    %155 = vector.load %arg14[%c0_71, %c0_72] : memref<1x128xf32, #tpu.memory_space<vmem>>, vector<1x128xf32>
    %c0_73 = arith.constant 0 : index
    %c0_74 = arith.constant 0 : index
    %156 = vector.load %arg15[%c0_73, %c0_74] : memref<1x128xf32, #tpu.memory_space<vmem>>, vector<1x128xf32>
    %cst_75 = arith.constant dense<0.000000e+00> : vector<128xf32>
    %157 = vector.multi_reduction <add>, %154, %cst_75 [0] : vector<16x128xf32> to vector<128xf32>
    %158 = vector.shape_cast %157 : vector<128xf32> to vector<1x128xf32>
    %cst_76 = arith.constant 1.600000e+01 : f32
    %159 = vector.broadcast %cst_76 : f32 to vector<1x128xf32>
    %160 = arith.divf %158, %159 : vector<1x128xf32>
    %161 = arith.mulf %154, %154 : vector<16x128xf32>
    %cst_77 = arith.constant dense<0.000000e+00> : vector<128xf32>
    %162 = vector.multi_reduction <add>, %161, %cst_77 [0] : vector<16x128xf32> to vector<128xf32>
    %163 = vector.shape_cast %162 : vector<128xf32> to vector<1x128xf32>
    %cst_78 = arith.constant 1.600000e+01 : f32
    %164 = vector.broadcast %cst_78 : f32 to vector<1x128xf32>
    %165 = arith.divf %163, %164 : vector<1x128xf32>
    %166 = arith.mulf %160, %160 : vector<1x128xf32>
    %167 = arith.subf %165, %166 : vector<1x128xf32>
    %cst_79 = arith.constant 0.000000e+00 : f32
    %168 = vector.broadcast %cst_79 : f32 to vector<1x128xf32>
    %169 = arith.maximumf %167, %168 : vector<1x128xf32>
    %170 = vector.broadcast %160 : vector<1x128xf32> to vector<16x128xf32>
    %171 = arith.subf %154, %170 : vector<16x128xf32>
    %cst_80 = arith.constant 9.99999974E-6 : f32
    %172 = vector.broadcast %cst_80 : f32 to vector<1x128xf32>
    %173 = arith.addf %169, %172 : vector<1x128xf32>
    %174 = math.rsqrt %173 : vector<1x128xf32>
    %175 = vector.broadcast %174 : vector<1x128xf32> to vector<16x128xf32>
    %176 = arith.mulf %171, %175 : vector<16x128xf32>
    %177 = vector.broadcast %155 : vector<1x128xf32> to vector<16x128xf32>
    %178 = arith.mulf %176, %177 : vector<16x128xf32>
    %179 = vector.broadcast %156 : vector<1x128xf32> to vector<16x128xf32>
    %180 = arith.addf %178, %179 : vector<16x128xf32>
    %cst_81 = arith.constant 0.000000e+00 : f32
    %181 = vector.broadcast %cst_81 : f32 to vector<16x128xf32>
    %182 = arith.maximumf %180, %181 : vector<16x128xf32>
    %183 = arith.addf %182, %103 : vector<16x128xf32>
    %c0_82 = arith.constant 0 : index
    %c0_83 = arith.constant 0 : index
    %184 = vector.load %arg16[%c0_82, %c0_83] : memref<2x16xbf16, #tpu.memory_space<vmem>>, vector<2x16xbf16>
    %185 = arith.truncf %183 : vector<16x128xf32> to vector<16x128xbf16>
    %cst_84 = arith.constant dense<0.000000e+00> : vector<2x128xf32>
    %186 = tpu.matmul %184, %185, %cst_84 {dimension_numbers = #tpu.dot_dimension_numbers<[1], [0], [0], [1], [0, 0, 1, 1], [], []>} : vector<2x16xbf16>, vector<16x128xbf16>, vector<2x128xf32> -> vector<2x128xf32>
    %187 = arith.truncf %186 : vector<2x128xf32> to vector<2x128xbf16>
    %c0_85 = arith.constant 0 : index
    %c0_86 = arith.constant 0 : index
    %188 = vector.load %arg17[%c0_85, %c0_86] : memref<128x128xbf16, #tpu.memory_space<vmem>>, vector<128x128xbf16>
    %cst_87 = arith.constant dense<0.000000e+00> : vector<2x128xf32>
    %189 = tpu.matmul %187, %188, %cst_87 {dimension_numbers = #tpu.dot_dimension_numbers<[1], [0], [0], [1], [0, 0, 1, 1], [], []>} : vector<2x128xbf16>, vector<128x128xbf16>, vector<2x128xf32> -> vector<2x128xf32>
    %c0_88 = arith.constant 0 : index
    %c0_89 = arith.constant 0 : index
    %190 = vector.load %arg18[%c0_88, %c0_89] : memref<1x128xf32, #tpu.memory_space<vmem>>, vector<1x128xf32>
    %191 = vector.broadcast %190 : vector<1x128xf32> to vector<2x128xf32>
    %192 = arith.addf %189, %191 : vector<2x128xf32>
    %cst_90 = arith.constant 0.000000e+00 : f32
    %193 = vector.broadcast %cst_90 : f32 to vector<2x128xf32>
    %194 = arith.maximumf %192, %193 : vector<2x128xf32>
    %195 = arith.truncf %194 : vector<2x128xf32> to vector<2x128xbf16>
    %c0_91 = arith.constant 0 : index
    %c0_92 = arith.constant 0 : index
    %196 = vector.load %arg19[%c0_91, %c0_92] : memref<128x128xbf16, #tpu.memory_space<vmem>>, vector<128x128xbf16>
    %cst_93 = arith.constant dense<0.000000e+00> : vector<2x128xf32>
    %197 = tpu.matmul %195, %196, %cst_93 {dimension_numbers = #tpu.dot_dimension_numbers<[1], [0], [0], [1], [0, 0, 1, 1], [], []>} : vector<2x128xbf16>, vector<128x128xbf16>, vector<2x128xf32> -> vector<2x128xf32>
    %c0_94 = arith.constant 0 : index
    %c0_95 = arith.constant 0 : index
    %198 = vector.load %arg20[%c0_94, %c0_95] : memref<1x128xf32, #tpu.memory_space<vmem>>, vector<1x128xf32>
    %199 = vector.broadcast %198 : vector<1x128xf32> to vector<2x128xf32>
    %200 = arith.addf %197, %199 : vector<2x128xf32>
    %cst_96 = arith.constant 0.000000e+00 : f32
    %201 = vector.broadcast %cst_96 : f32 to vector<2x128xf32>
    %202 = arith.maximumf %200, %201 : vector<2x128xf32>
    %203 = arith.truncf %202 : vector<2x128xf32> to vector<2x128xbf16>
    %c0_97 = arith.constant 0 : index
    %c0_98 = arith.constant 0 : index
    %204 = vector.load %arg21[%c0_97, %c0_98] : memref<128x128xbf16, #tpu.memory_space<vmem>>, vector<128x128xbf16>
    %cst_99 = arith.constant dense<0.000000e+00> : vector<2x128xf32>
    %205 = tpu.matmul %203, %204, %cst_99 {dimension_numbers = #tpu.dot_dimension_numbers<[1], [0], [0], [1], [0, 0, 1, 1], [], []>} : vector<2x128xbf16>, vector<128x128xbf16>, vector<2x128xf32> -> vector<2x128xf32>
    %c0_100 = arith.constant 0 : index
    %c0_101 = arith.constant 0 : index
    %206 = vector.load %arg22[%c0_100, %c0_101] : memref<1x128xf32, #tpu.memory_space<vmem>>, vector<1x128xf32>
    %207 = vector.broadcast %206 : vector<1x128xf32> to vector<2x128xf32>
    %208 = arith.addf %205, %207 : vector<2x128xf32>
    %cst_102 = arith.constant 0.000000e+00 : f32
    %209 = vector.broadcast %cst_102 : f32 to vector<2x128xf32>
    %210 = arith.maximumf %208, %209 : vector<2x128xf32>
    %211 = arith.truncf %210 : vector<2x128xf32> to vector<2x128xbf16>
    %c0_103 = arith.constant 0 : index
    %c0_104 = arith.constant 0 : index
    %212 = vector.load %arg23[%c0_103, %c0_104] : memref<128x128xbf16, #tpu.memory_space<vmem>>, vector<128x128xbf16>
    %cst_105 = arith.constant dense<0.000000e+00> : vector<2x128xf32>
    %213 = tpu.matmul %211, %212, %cst_105 {dimension_numbers = #tpu.dot_dimension_numbers<[1], [0], [0], [1], [0, 0, 1, 1], [], []>} : vector<2x128xbf16>, vector<128x128xbf16>, vector<2x128xf32> -> vector<2x128xf32>
    %c0_106 = arith.constant 0 : index
    %c0_107 = arith.constant 0 : index
    %214 = vector.load %arg24[%c0_106, %c0_107] : memref<1x128xf32, #tpu.memory_space<vmem>>, vector<1x128xf32>
    %215 = vector.broadcast %214 : vector<1x128xf32> to vector<2x128xf32>
    %216 = arith.addf %213, %215 : vector<2x128xf32>
    %c0_108 = arith.constant 0 : index
    %c0_109 = arith.constant 0 : index
    %217 = vector.load %arg25[%c0_108, %c0_109] : memref<2x128xf32, #tpu.memory_space<vmem>>, vector<2x128xf32>
    tpu.vector_store %arg25[%c0_108, %c0_109], %216 {strides = array<i32>} : memref<2x128xf32, #tpu.memory_space<vmem>>, vector<2x128xf32>,
    return
  }
}

</mosaic_0001>

<llo_original>
// kernel: graph_encoder_one_head.1
$region0: #{graph_encoder_one_head.1}
  #allocation0 [shape = 'u32[]', space=smem, size = 0x4, offset = 0x4, fixed_abs, tag = 'smem constant byte address 0x4 - core index']
  #allocation1 [shape = 'u32[72,128]{1,0:T(1,128)}', space=vmem, size = 0x9000, scoped, tag = 'internal scratch']
  #allocation2 [shape = 'bf16[16,16]{1,0:T(8,128)(2,1)}', space=vmem, size = 0x1000, scoped, tag = 'scratch operand']
  #allocation3 [shape = 's32[1]{0}', space=sflag, size = 0x4, scoped, tag = 'scratch operand']
  #allocation4 [shape = 'f32[16,1]{1,0:T(8,128)}', space=vmem, size = 0x2000, scoped, tag = 'scratch operand']
  #allocation5 [shape = 'f32[16,128]{1,0:T(8,128)}', space=vmem, size = 0x2000, scoped, tag = 'scratch operand']
  #allocation8 [shape = 's32[]', space=sflag, size = 0x4, offset = 0, fixed_abs, tag = 'sflag constant byte address 0x0 - dummy sync flag']
  %s0 = inlined_call_operand.vmem [shape: bf16[16,16], index: 0, kind: input, shape index: {}]
  %s1 = inlined_call_operand.vmem [shape: f32[16,128], index: 1, kind: input, shape index: {}]
  %s2 = inlined_call_operand.vmem [shape: bf16[128,128], index: 2, kind: input, shape index: {}]
  %s3 = inlined_call_operand.vmem [shape: f32[1,128], index: 3, kind: input, shape index: {}]
  %s4 = inlined_call_operand.vmem [shape: f32[1,128], index: 4, kind: input, shape index: {}]
  %s5 = inlined_call_operand.vmem [shape: bf16[128,128], index: 5, kind: input, shape index: {}]
  %s6 = inlined_call_operand.vmem [shape: f32[1,128], index: 6, kind: input, shape index: {}]
  %s7 = inlined_call_operand.vmem [shape: f32[1,128], index: 7, kind: input, shape index: {}]
  %s8 = inlined_call_operand.vmem [shape: bf16[128,128], index: 8, kind: input, shape index: {}]
  %s9 = inlined_call_operand.vmem [shape: f32[1,128], index: 9, kind: input, shape index: {}]
  %s10 = inlined_call_operand.vmem [shape: f32[1,128], index: 10, kind: input, shape index: {}]
  %s11 = inlined_call_operand.vmem [shape: bf16[128,128], index: 11, kind: input, shape index: {}]
  %s12 = inlined_call_operand.vmem [shape: f32[1,128], index: 12, kind: input, shape index: {}]
  %s13 = inlined_call_operand.vmem [shape: f32[1,128], index: 13, kind: input, shape index: {}]
  %s14 = inlined_call_operand.vmem [shape: f32[1,128], index: 14, kind: input, shape index: {}]
  %s15 = inlined_call_operand.vmem [shape: f32[1,128], index: 15, kind: input, shape index: {}]
  %s16 = inlined_call_operand.vmem [shape: bf16[2,16], index: 16, kind: input, shape index: {}]
  %s17 = inlined_call_operand.vmem [shape: bf16[128,128], index: 17, kind: input, shape index: {}]
  %s18 = inlined_call_operand.vmem [shape: f32[1,128], index: 18, kind: input, shape index: {}]
  %s19 = inlined_call_operand.vmem [shape: bf16[128,128], index: 19, kind: input, shape index: {}]
  %s20 = inlined_call_operand.vmem [shape: f32[1,128], index: 20, kind: input, shape index: {}]
  %s21 = inlined_call_operand.vmem [shape: bf16[128,128], index: 21, kind: input, shape index: {}]
  %s22 = inlined_call_operand.vmem [shape: f32[1,128], index: 22, kind: input, shape index: {}]
  %s23 = inlined_call_operand.vmem [shape: bf16[128,128], index: 23, kind: input, shape index: {}]
  %s24 = inlined_call_operand.vmem [shape: f32[1,128], index: 24, kind: input, shape index: {}]
  %s25 = inlined_call_operand.hbm [shape: f32[2,128], index: 25, kind: output, shape index: {}]
  %s26 = sld [smem:[#allocation0]]
  $region140: #{graph_encoder_one_head.1} parent=0
    _
  %s28 = ssub.s32 1, %s26
  %s29 = scalar_select 0, %s28, %s26
  $region1: #{graph_encoder_one_head.1} parent=0
    #allocation6 [shape = 'u8[1024]{0}', space=vmem, size = 0x400, scoped, tag = 'output window, operand 0, single buffered']
    #allocation7 [shape = 's32[1]{0}', space=sflag, size = 0x4, scoped, tag = 'scoped memory for graph_encoder_one_head.1']
    %30 = vsyncpa [#allocation7], 0
    // Predicated region
    $region2: #{graph_encoder_one_head.1} parent=1 // pred_check
      _
    $region3: #{graph_encoder_one_head.1} parent=1 // pred_check_branch
      %32 = sbr.rel (0) target = $region5
    $region4: #{graph_encoder_one_head.1} parent=1 // pred_region
      _
    $region5: #{graph_encoder_one_head.1} parent=1 // pred_fallthru
      _
    // Predicated region
    $region6: #{graph_encoder_one_head.1} parent=1 // pred_check
      _
    $region7: #{graph_encoder_one_head.1} parent=1 // pred_check_branch
      %34 = sbr.rel (0) target = $region9
    $region8: #{graph_encoder_one_head.1} parent=1 // pred_region
      _
    $region9: #{graph_encoder_one_head.1} parent=1 // pred_fallthru
      _
    // Predicated region
    $region10: #{graph_encoder_one_head.1} parent=1 // pred_check
      _
    $region11: #{graph_encoder_one_head.1} parent=1 // pred_check_branch
      %36 = sbr.rel (0) target = $region13
    $region12: #{graph_encoder_one_head.1} parent=1 // pred_region
      _
    $region13: #{graph_encoder_one_head.1} parent=1 // pred_fallthru
      _
    // Predicated region
    $region14: #{graph_encoder_one_head.1} parent=1 // pred_check
      _
    $region15: #{graph_encoder_one_head.1} parent=1 // pred_check_branch
      %38 = sbr.rel (0) target = $region17
    $region16: #{graph_encoder_one_head.1} parent=1 // pred_region
      _
    $region17: #{graph_encoder_one_head.1} parent=1 // pred_fallthru
      _
    // Predicated region
    $region18: #{graph_encoder_one_head.1} parent=1 // pred_check
      _
    $region19: #{graph_encoder_one_head.1} parent=1 // pred_check_branch
      %40 = sbr.rel (0) target = $region21
    $region20: #{graph_encoder_one_head.1} parent=1 // pred_region
      _
    $region21: #{graph_encoder_one_head.1} parent=1 // pred_fallthru
      _
    // Predicated region
    $region22: #{graph_encoder_one_head.1} parent=1 // pred_check
      _
    $region23: #{graph_encoder_one_head.1} parent=1 // pred_check_branch
      %42 = sbr.rel (0) target = $region25
    $region24: #{graph_encoder_one_head.1} parent=1 // pred_region
      _
    $region25: #{graph_encoder_one_head.1} parent=1 // pred_fallthru
      _
    // Predicated region
    $region26: #{graph_encoder_one_head.1} parent=1 // pred_check
      _
    $region27: #{graph_encoder_one_head.1} parent=1 // pred_check_branch
      %44 = sbr.rel (0) target = $region29
    $region28: #{graph_encoder_one_head.1} parent=1 // pred_region
      _
    $region29: #{graph_encoder_one_head.1} parent=1 // pred_fallthru
      _
    // Predicated region
    $region30: #{graph_encoder_one_head.1} parent=1 // pred_check
      _
    $region31: #{graph_encoder_one_head.1} parent=1 // pred_check_branch
      %46 = sbr.rel (0) target = $region33
    $region32: #{graph_encoder_one_head.1} parent=1 // pred_region
      _
    $region33: #{graph_encoder_one_head.1} parent=1 // pred_fallthru
      _
    // Predicated region
    $region34: #{graph_encoder_one_head.1} parent=1 // pred_check
      _
    $region35: #{graph_encoder_one_head.1} parent=1 // pred_check_branch
      %48 = sbr.rel (0) target = $region37
    $region36: #{graph_encoder_one_head.1} parent=1 // pred_region
      _
    $region37: #{graph_encoder_one_head.1} parent=1 // pred_fallthru
      _
    // Predicated region
    $region38: #{graph_encoder_one_head.1} parent=1 // pred_check
      _
    $region39: #{graph_encoder_one_head.1} parent=1 // pred_check_branch
      %50 = sbr.rel (0) target = $region41
    $region40: #{graph_encoder_one_head.1} parent=1 // pred_region
      _
    $region41: #{graph_encoder_one_head.1} parent=1 // pred_fallthru
      _
    // Predicated region
    $region42: #{graph_encoder_one_head.1} parent=1 // pred_check
      _
    $region43: #{graph_encoder_one_head.1} parent=1 // pred_check_branch
      %52 = sbr.rel (0) target = $region45
    $region44: #{graph_encoder_one_head.1} parent=1 // pred_region
      _
    $region45: #{graph_encoder_one_head.1} parent=1 // pred_fallthru
      _
    // Predicated region
    $region46: #{graph_encoder_one_head.1} parent=1 // pred_check
      _
    $region47: #{graph_encoder_one_head.1} parent=1 // pred_check_branch
      %54 = sbr.rel (0) target = $region49
    $region48: #{graph_encoder_one_head.1} parent=1 // pred_region
      _
    $region49: #{graph_encoder_one_head.1} parent=1 // pred_fallthru
      _
    // Predicated region
    $region50: #{graph_encoder_one_head.1} parent=1 // pred_check
      _
    $region51: #{graph_encoder_one_head.1} parent=1 // pred_check_branch
      %56 = sbr.rel (0) target = $region53
    $region52: #{graph_encoder_one_head.1} parent=1 // pred_region
      _
    $region53: #{graph_encoder_one_head.1} parent=1 // pred_fallthru
      _
    // Predicated region
    $region54: #{graph_encoder_one_head.1} parent=1 // pred_check
      _
    $region55: #{graph_encoder_one_head.1} parent=1 // pred_check_branch
      %58 = sbr.rel (0) target = $region57
    $region56: #{graph_encoder_one_head.1} parent=1 // pred_region
      _
    $region57: #{graph_encoder_one_head.1} parent=1 // pred_fallthru
      _
    // Predicated region
    $region58: #{graph_encoder_one_head.1} parent=1 // pred_check
      _
    $region59: #{graph_encoder_one_head.1} parent=1 // pred_check_branch
      %60 = sbr.rel (0) target = $region61
    $region60: #{graph_encoder_one_head.1} parent=1 // pred_region
      _
    $region61: #{graph_encoder_one_head.1} parent=1 // pred_fallthru
      _
    // Predicated region
    $region62: #{graph_encoder_one_head.1} parent=1 // pred_check
      _
    $region63: #{graph_encoder_one_head.1} parent=1 // pred_check_branch
      %62 = sbr.rel (0) target = $region65
    $region64: #{graph_encoder_one_head.1} parent=1 // pred_region
      _
    $region65: #{graph_encoder_one_head.1} parent=1 // pred_fallthru
      _
    // Predicated region
    $region66: #{graph_encoder_one_head.1} parent=1 // pred_check
      _
    $region67: #{graph_encoder_one_head.1} parent=1 // pred_check_branch
      %64 = sbr.rel (0) target = $region69
    $region68: #{graph_encoder_one_head.1} parent=1 // pred_region
      _
    $region69: #{graph_encoder_one_head.1} parent=1 // pred_fallthru
      _
    // Predicated region
    $region70: #{graph_encoder_one_head.1} parent=1 // pred_check
      _
    $region71: #{graph_encoder_one_head.1} parent=1 // pred_check_branch
      %66 = sbr.rel (0) target = $region73
    $region72: #{graph_encoder_one_head.1} parent=1 // pred_region
      _
    $region73: #{graph_encoder_one_head.1} parent=1 // pred_fallthru
      _
    // Predicated region
    $region74: #{graph_encoder_one_head.1} parent=1 // pred_check
      _
    $region75: #{graph_encoder_one_head.1} parent=1 // pred_check_branch
      %68 = sbr.rel (0) target = $region77
    $region76: #{graph_encoder_one_head.1} parent=1 // pred_region
      _
    $region77: #{graph_encoder_one_head.1} parent=1 // pred_fallthru
      _
    // Predicated region
    $region78: #{graph_encoder_one_head.1} parent=1 // pred_check
      _
    $region79: #{graph_encoder_one_head.1} parent=1 // pred_check_branch
      %70 = sbr.rel (0) target = $region81
    $region80: #{graph_encoder_one_head.1} parent=1 // pred_region
      _
    $region81: #{graph_encoder_one_head.1} parent=1 // pred_fallthru
      _
    // Predicated region
    $region82: #{graph_encoder_one_head.1} parent=1 // pred_check
      _
    $region83: #{graph_encoder_one_head.1} parent=1 // pred_check_branch
      %72 = sbr.rel (0) target = $region85
    $region84: #{graph_encoder_one_head.1} parent=1 // pred_region
      _
    $region85: #{graph_encoder_one_head.1} parent=1 // pred_fallthru
      _
    // Predicated region
    $region86: #{graph_encoder_one_head.1} parent=1 // pred_check
      _
    $region87: #{graph_encoder_one_head.1} parent=1 // pred_check_branch
      %74 = sbr.rel (0) target = $region89
    $region88: #{graph_encoder_one_head.1} parent=1 // pred_region
      _
    $region89: #{graph_encoder_one_head.1} parent=1 // pred_fallthru
      _
    // Predicated region
    $region90: #{graph_encoder_one_head.1} parent=1 // pred_check
      _
    $region91: #{graph_encoder_one_head.1} parent=1 // pred_check_branch
      %76 = sbr.rel (0) target = $region93
    $region92: #{graph_encoder_one_head.1} parent=1 // pred_region
      _
    $region93: #{graph_encoder_one_head.1} parent=1 // pred_fallthru
      _
    // Predicated region
    $region94: #{graph_encoder_one_head.1} parent=1 // pred_check
      _
    $region95: #{graph_encoder_one_head.1} parent=1 // pred_check_branch
      %78 = sbr.rel (0) target = $region97
    $region96: #{graph_encoder_one_head.1} parent=1 // pred_region
      _
    $region97: #{graph_encoder_one_head.1} parent=1 // pred_fallthru
      _
    // Predicated region
    $region98: #{graph_encoder_one_head.1} parent=1 // pred_check
      _
    $region99: #{graph_encoder_one_head.1} parent=1 // pred_check_branch
      %81 = sbr.rel (0) target = $region101
    $region100: #{graph_encoder_one_head.1} parent=1 // pred_region
      // Predicated region
      $region113: #{graph_encoder_one_head.1} parent=100 // pred_check
        _
      $region114: #{graph_encoder_one_head.1} parent=100 // pred_check_branch
        %97 = sbr.rel (0) target = $region116
      $region115: #{graph_encoder_one_head.1} parent=100 // pred_region
        loop: start=0, step=1, limit=1
        $region117: #{graph_encoder_one_head.1} parent=115 // loop_pre_header
          _
        $region118: #{graph_encoder_one_head.1} parent=115 // loop_header
          %s99 = sphi 0, %s103
          %p100 = scmp.ge.s32.totalorder %s99, 1
          %s104 = sphi %s0, %s0
          %s105 = sphi [#allocation2], [#allocation2]
        $region119: #{graph_encoder_one_head.1} parent=115 // loop_header_branch
          %102 = sbr.rel (%p100) target = $region123
        $region120: #{graph_encoder_one_head.1} parent=115 // loop_body
          %v106 = vld [vmem:[%s104] sm:$0xff]
          %107 = vst [vmem:[%s105] sm:$0xff] %v106
        $region121: #{graph_encoder_one_head.1} parent=115 // loop_footer
          %s103 = sadd.s32 1, %s99
        $region122: #{graph_encoder_one_head.1} parent=115 // loop_footer_branch
          %98 = sbr.rel target = $region118
        $region123: #{graph_encoder_one_head.1} parent=115 // loop_exit
          _
      $region116: #{graph_encoder_one_head.1} parent=100 // pred_fallthru
        _
      // Predicated region
      $region124: #{graph_encoder_one_head.1} parent=100 // pred_check
        _
      $region125: #{graph_encoder_one_head.1} parent=100 // pred_check_branch
        %109 = sbr.rel target = $region127
      $region126: #{graph_encoder_one_head.1} parent=100 // pred_region
        _
      $region127: #{graph_encoder_one_head.1} parent=100 // pred_fallthru
        _
    $region101: #{graph_encoder_one_head.1} parent=1 // pred_fallthru
      _
    // Predicated region
    $region102: #{graph_encoder_one_head.1} parent=1 // pred_check
      _
    $region103: #{graph_encoder_one_head.1} parent=1 // pred_check_branch
      %83 = sbr.rel target = $region105
    $region104: #{graph_encoder_one_head.1} parent=1 // pred_region
      %s85 = ssub.s32 256, 1
      loop: start=0, step=1, limit=1
      $region106: #{graph_encoder_one_head.1} parent=104 // loop_pre_header
        _
      $region107: #{graph_encoder_one_head.1} parent=104 // loop_header
        %s87 = sphi 0, %s91
        %p88 = scmp.ge.s32.totalorder %s87, 1
        %s92 = sphi %s0, %s0
        %s93 = sphi [#allocation2], [#allocation2]
      $region108: #{graph_encoder_one_head.1} parent=104 // loop_header_branch
        %90 = sbr.rel (%p88) target = $region112
      $region109: #{graph_encoder_one_head.1} parent=104 // loop_body
        %v94 = vld [vmem:[%s92] sm:%s85]
        %95 = vst [vmem:[%s93] sm:%s85] %v94
      $region110: #{graph_encoder_one_head.1} parent=104 // loop_footer
        %s91 = sadd.s32 1, %s87
      $region111: #{graph_encoder_one_head.1} parent=104 // loop_footer_branch
        %86 = sbr.rel target = $region107
      $region112: #{graph_encoder_one_head.1} parent=104 // loop_exit
        _
    $region105: #{graph_encoder_one_head.1} parent=1 // pred_fallthru
      _
    // Predicated region
    $region128: #{graph_encoder_one_head.1} parent=1 // pred_check
      _
    $region129: #{graph_encoder_one_head.1} parent=1 // pred_check_branch
      %112 = sbr.rel (0) target = $region131
    $region130: #{graph_encoder_one_head.1} parent=1 // pred_region
      %113 = vsyncadd [#allocation3], 128
    $region131: #{graph_encoder_one_head.1} parent=1 // pred_fallthru
      _
    %v114 = vld [vmem:[%s1] sm:$0xff]
    %v115 = vld [vmem:[%s1 + $0x8] sm:$0xff]
    %v116 = vpack.c.bf16 %v115, %v114
    %v117 = vld [vmem:[%s2] sm:$0xf]
    %v118 = vld [vmem:[%s2 + $0x4] sm:$0xf]
    %v119 = vld [vmem:[%s2 + $0x8] sm:$0xf]
    %v120 = vld [vmem:[%s2 + $0xc] sm:$0xf]
    %v121 = vld [vmem:[%s2 + $0x10] sm:$0xf]
    %v122 = vld [vmem:[%s2 + $0x14] sm:$0xf]
    %v123 = vld [vmem:[%s2 + $0x18] sm:$0xf]
    %v124 = vld [vmem:[%s2 + $0x1c] sm:$0xf]
    %v125 = vld [vmem:[%s2 + $0x20] sm:$0xf]
    %v126 = vld [vmem:[%s2 + $0x24] sm:$0xf]
    %v127 = vld [vmem:[%s2 + $0x28] sm:$0xf]
    %v128 = vld [vmem:[%s2 + $0x2c] sm:$0xf]
    %v129 = vld [vmem:[%s2 + $0x30] sm:$0xf]
    %v130 = vld [vmem:[%s2 + $0x34] sm:$0xf]
    %v131 = vld [vmem:[%s2 + $0x38] sm:$0xf]
    %v132 = vld [vmem:[%s2 + $0x3c] sm:$0xf]
    %v149 = vunpack.c.l.b16 %v117
    %v150 = vunpack.c.l.b16 %v118
    %v151 = vunpack.c.l.b16 %v119
    %v152 = vunpack.c.l.b16 %v120
    %v153 = vunpack.c.l.b16 %v121
    %v154 = vunpack.c.l.b16 %v122
    %v155 = vunpack.c.l.b16 %v123
    %v156 = vunpack.c.l.b16 %v124
    %v157 = vunpack.c.l.b16 %v125
    %v158 = vunpack.c.l.b16 %v126
    %v159 = vunpack.c.l.b16 %v127
    %v160 = vunpack.c.l.b16 %v128
    %v161 = vunpack.c.l.b16 %v129
    %v162 = vunpack.c.l.b16 %v130
    %v163 = vunpack.c.l.b16 %v131
    %v164 = vunpack.c.l.b16 %v132
    %v165 = vpack.c.b16 %v150, %v149
    %v166 = vpack.c.b16 %v152, %v151
    %v167 = vpack.c.b16 %v154, %v153
    %v168 = vpack.c.b16 %v156, %v155
    %v169 = vpack.c.b16 %v158, %v157
    %v170 = vpack.c.b16 %v160, %v159
    %v171 = vpack.c.b16 %v162, %v161
    %v172 = vpack.c.b16 %v164, %v163
    %181 = vmatpush.bf16.msra.mxu0 %v172
    %182 = vmatpush.bf16.msra.mxu0 %v171
    %183 = vmatpush.bf16.msra.mxu0 %v170
    %184 = vmatpush.bf16.msra.mxu0 %v169
    %185 = vmatpush.bf16.msra.mxu0 %v168
    %186 = vmatpush.bf16.msra.mxu0 %v167
    %187 = vmatpush.bf16.msra.mxu0 %v166
    %188 = vmatpush.bf16.msra.mxu0 %v165
    %189 = vmatmul.bf16.gmra.mxu0 %v116
    %v190 = vpop.f32.mrf.mxu0
    %v191 = vadd.f32 0.0, %v190
    %v192 = vpop.f32.mrf.mxu0
    %v193 = vadd.f32 0.0, %v192
    %194 = vdwg.mxu0
    %s195 = smul.u32 4, 2
    %s196 = smul.u32 %s195, 1
    %s197 = sshll.u32 %s196, 4
    %198 = dma.done [#allocation3], %s197
    %v199 = vld [vmem:[#allocation2] sm:$0xf]
    %v200 = vld [vmem:[#allocation2 + $0x4] sm:$0xf]
    %v201 = vpack.c.bf16 %v193, %v191
    %v204 = vunpack.c.l.b16 %v199
    %v205 = vunpack.c.l.b16 %v200
    %v206 = vpack.c.b16 %v205, %v204
    %vm207 = vcmask 130048
    %v209 = vsel %vm207, %v206, 0
    %211 = vmatpush.bf16.msra.mxu0 0
    %212 = vmatpush.bf16.msra.mxu0 0
    %213 = vmatpush.bf16.msra.mxu0 0
    %214 = vmatpush.bf16.msra.mxu0 0
    %215 = vmatpush.bf16.msra.mxu0 0
    %216 = vmatpush.bf16.msra.mxu0 0
    %217 = vmatpush.bf16.msra.mxu0 0
    %218 = vmatpush.bf16.msra.mxu0 %v201
    %219 = vmatmul.bf16.gmra.mxu0 %v209
    %v220 = vpop.f32.mrf.mxu0
    %v221 = vadd.f32 0.0, %v220
    %v222 = vpop.f32.mrf.mxu0
    %v223 = vadd.f32 0.0, %v222
    %224 = vdwg.mxu0
    %v225 = vld [vmem:[%s3] sm:$0x1]
    %v226 = vld [vmem:[%s4] sm:$0x1]
    %v227 = vadd.f32 %v221, %v223
    %v228 = vrot.slane %v227, 4
    %v229 = vadd.f32 %v227, %v228
    %v230 = vrot.slane %v229, 2
    %v231 = vadd.f32 %v229, %v230
    %v232 = vrot.slane %v231, 1
    %v233 = vadd.f32 %v231, %v232
    %v234 = vrcp.pop 16.0
    %v235 = vmul.f32 16.0, %v234
    %v236 = vsub.f32 1.0, %v235
    %v237 = vmul.f32 %v234, %v236
    %v238 = vadd.f32 %v234, %v237
    %vm239 = vweird.f32 %v234
    %v240 = vsel %vm239, %v234, %v238
    %v241 = vmul.f32 %v233, %v240
    %v242 = vmul.f32 %v221, %v221
    %v243 = vmul.f32 %v223, %v223
    %v244 = vadd.f32 %v242, %v243
    %v245 = vrot.slane %v244, 4
    %v246 = vadd.f32 %v244, %v245
    %v247 = vrot.slane %v246, 2
    %v248 = vadd.f32 %v246, %v247
    %v249 = vrot.slane %v248, 1
    %v250 = vadd.f32 %v248, %v249
    %v251 = vmul.f32 %v250, %v240
    %v252 = vmul.f32 %v241, %v241
    %v253 = vsub.f32 %v251, %v252
    %v254 = vmax.f32 %v253, 0.0
    %v255 = vsub.f32 %v221, %v241
    %v256 = vsub.f32 %v223, %v241
    %v257 = vadd.f32 %v254, 1e-05
    %v258 = vrsqrt.pop %v257
    %v259 = vmul.f32 %v258, %v257
    %v260 = vmul.f32 %v259, %v258
    %v261 = vmul.f32 0.5, %v260
    %v262 = vsub.f32 1.5, %v261
    %v263 = vmul.f32 %v258, %v262
    %vm264 = vweird.f32 %v257
    %vm265 = vweird.f32 %v258
    %vm266 = vmor %vm264, %vm265
    %v267 = vsel %vm266, %v258, %v263
    %v268 = vmul.f32 %v255, %v267
    %v269 = vmul.f32 %v256, %v267
    %v271 = vperm.slane %v225, 0
    %v273 = vmul.f32 %v268, %v271
    %v274 = vmul.f32 %v269, %v271
    %v276 = vperm.slane %v226, 0
    %v278 = vadd.f32 %v273, %v276
    %v279 = vadd.f32 %v274, %v276
    %v280 = vmax.f32 %v278, 0.0
    %v281 = vmax.f32 %v279, 0.0
    %v282 = vadd.f32 %v280, %v114
    %v283 = vadd.f32 %v281, %v115
    %v284 = vpack.c.bf16 %v283, %v282
    %v285 = vld [vmem:[%s5] sm:$0xf]
    %v286 = vld [vmem:[%s5 + $0x4] sm:$0xf]
    %v287 = vld [vmem:[%s5 + $0x8] sm:$0xf]
    %v288 = vld [vmem:[%s5 + $0xc] sm:$0xf]
    %v289 = vld [vmem:[%s5 + $0x10] sm:$0xf]
    %v290 = vld [vmem:[%s5 + $0x14] sm:$0xf]
    %v291 = vld [vmem:[%s5 + $0x18] sm:$0xf]
    %v292 = vld [vmem:[%s5 + $0x1c] sm:$0xf]
    %v293 = vld [vmem:[%s5 + $0x20] sm:$0xf]
    %v294 = vld [vmem:[%s5 + $0x24] sm:$0xf]
    %v295 = vld [vmem:[%s5 + $0x28] sm:$0xf]
    %v296 = vld [vmem:[%s5 + $0x2c] sm:$0xf]
    %v297 = vld [vmem:[%s5 + $0x30] sm:$0xf]
    %v298 = vld [vmem:[%s5 + $0x34] sm:$0xf]
    %v299 = vld [vmem:[%s5 + $0x38] sm:$0xf]
    %v300 = vld [vmem:[%s5 + $0x3c] sm:$0xf]
    %v317 = vunpack.c.l.b16 %v285
    %v318 = vunpack.c.l.b16 %v286
    %v319 = vunpack.c.l.b16 %v287
    %v320 = vunpack.c.l.b16 %v288
    %v321 = vunpack.c.l.b16 %v289
    %v322 = vunpack.c.l.b16 %v290
    %v323 = vunpack.c.l.b16 %v291
    %v324 = vunpack.c.l.b16 %v292
    %v325 = vunpack.c.l.b16 %v293
    %v326 = vunpack.c.l.b16 %v294
    %v327 = vunpack.c.l.b16 %v295
    %v328 = vunpack.c.l.b16 %v296
    %v329 = vunpack.c.l.b16 %v297
    %v330 = vunpack.c.l.b16 %v298
    %v331 = vunpack.c.l.b16 %v299
    %v332 = vunpack.c.l.b16 %v300
    %v333 = vpack.c.b16 %v318, %v317
    %v334 = vpack.c.b16 %v320, %v319
    %v335 = vpack.c.b16 %v322, %v321
    %v336 = vpack.c.b16 %v324, %v323
    %v337 = vpack.c.b16 %v326, %v325
    %v338 = vpack.c.b16 %v328, %v327
    %v339 = vpack.c.b16 %v330, %v329
    %v340 = vpack.c.b16 %v332, %v331
    %349 = vmatpush.bf16.msra.mxu0 %v340
    %350 = vmatpush.bf16.msra.mxu0 %v339
    %351 = vmatpush.bf16.msra.mxu0 %v338
    %352 = vmatpush.bf16.msra.mxu0 %v337
    %353 = vmatpush.bf16.msra.mxu0 %v336
    %354 = vmatpush.bf16.msra.mxu0 %v335
    %355 = vmatpush.bf16.msra.mxu0 %v334
    %356 = vmatpush.bf16.msra.mxu0 %v333
    %357 = vmatmul.bf16.gmra.mxu0 %v284
    %v358 = vpop.f32.mrf.mxu0
    %v359 = vadd.f32 0.0, %v358
    %v360 = vpop.f32.mrf.mxu0
    %v361 = vadd.f32 0.0, %v360
    %362 = vdwg.mxu0
    %v363 = vpack.c.bf16 %v361, %v359
    %364 = vmatpush.bf16.msra.mxu0 0
    %365 = vmatpush.bf16.msra.mxu0 0
    %366 = vmatpush.bf16.msra.mxu0 0
    %367 = vmatpush.bf16.msra.mxu0 0
    %368 = vmatpush.bf16.msra.mxu0 0
    %369 = vmatpush.bf16.msra.mxu0 0
    %370 = vmatpush.bf16.msra.mxu0 0
    %371 = vmatpush.bf16.msra.mxu0 %v363
    %372 = vmatmul.bf16.gmra.mxu0 %v209
    %v373 = vpop.f32.mrf.mxu0
    %v374 = vadd.f32 0.0, %v373
    %v375 = vpop.f32.mrf.mxu0
    %v376 = vadd.f32 0.0, %v375
    %377 = vdwg.mxu0
    %v378 = vld [vmem:[%s6] sm:$0x1]
    %v379 = vld [vmem:[%s7] sm:$0x1]
    %v380 = vadd.f32 %v374, %v376
    %v381 = vrot.slane %v380, 4
    %v382 = vadd.f32 %v380, %v381
    %v383 = vrot.slane %v382, 2
    %v384 = vadd.f32 %v382, %v383
    %v385 = vrot.slane %v384, 1
    %v386 = vadd.f32 %v384, %v385
    %v387 = vmul.f32 %v386, %v240
    %v388 = vmul.f32 %v374, %v374
    %v389 = vmul.f32 %v376, %v376
    %v390 = vadd.f32 %v388, %v389
    %v391 = vrot.slane %v390, 4
    %v392 = vadd.f32 %v390, %v391
    %v393 = vrot.slane %v392, 2
    %v394 = vadd.f32 %v392, %v393
    %v395 = vrot.slane %v394, 1
    %v396 = vadd.f32 %v394, %v395
    %v397 = vmul.f32 %v396, %v240
    %v398 = vmul.f32 %v387, %v387
    %v399 = vsub.f32 %v397, %v398
    %v400 = vmax.f32 %v399, 0.0
    %v401 = vsub.f32 %v374, %v387
    %v402 = vsub.f32 %v376, %v387
    %v403 = vadd.f32 %v400, 1e-05
    %v404 = vrsqrt.pop %v403
    %v405 = vmul.f32 %v404, %v403
    %v406 = vmul.f32 %v405, %v404
    %v407 = vmul.f32 0.5, %v406
    %v408 = vsub.f32 1.5, %v407
    %v409 = vmul.f32 %v404, %v408
    %vm410 = vweird.f32 %v403
    %vm411 = vweird.f32 %v404
    %vm412 = vmor %vm410, %vm411
    %v413 = vsel %vm412, %v404, %v409
    %v414 = vmul.f32 %v401, %v413
    %v415 = vmul.f32 %v402, %v413
    %v417 = vperm.slane %v378, 0
    %v419 = vmul.f32 %v414, %v417
    %v420 = vmul.f32 %v415, %v417
    %v422 = vperm.slane %v379, 0
    %v424 = vadd.f32 %v419, %v422
    %v425 = vadd.f32 %v420, %v422
    %v426 = vmax.f32 %v424, 0.0
    %v427 = vmax.f32 %v425, 0.0
    %v428 = vadd.f32 %v426, %v282
    %v429 = vadd.f32 %v427, %v283
    %v430 = vpack.c.bf16 %v429, %v428
    %v431 = vld [vmem:[%s8] sm:$0xf]
    %v432 = vld [vmem:[%s8 + $0x4] sm:$0xf]
    %v433 = vld [vmem:[%s8 + $0x8] sm:$0xf]
    %v434 = vld [vmem:[%s8 + $0xc] sm:$0xf]
    %v435 = vld [vmem:[%s8 + $0x10] sm:$0xf]
    %v436 = vld [vmem:[%s8 + $0x14] sm:$0xf]
    %v437 = vld [vmem:[%s8 + $0x18] sm:$0xf]
    %v438 = vld [vmem:[%s8 + $0x1c] sm:$0xf]
    %v439 = vld [vmem:[%s8 + $0x20] sm:$0xf]
    %v440 = vld [vmem:[%s8 + $0x24] sm:$0xf]
    %v441 = vld [vmem:[%s8 + $0x28] sm:$0xf]
    %v442 = vld [vmem:[%s8 + $0x2c] sm:$0xf]
    %v443 = vld [vmem:[%s8 + $0x30] sm:$0xf]
    %v444 = vld [vmem:[%s8 + $0x34] sm:$0xf]
    %v445 = vld [vmem:[%s8 + $0x38] sm:$0xf]
    %v446 = vld [vmem:[%s8 + $0x3c] sm:$0xf]
    %v463 = vunpack.c.l.b16 %v431
    %v464 = vunpack.c.l.b16 %v432
    %v465 = vunpack.c.l.b16 %v433
    %v466 = vunpack.c.l.b16 %v434
    %v467 = vunpack.c.l.b16 %v435
    %v468 = vunpack.c.l.b16 %v436
    %v469 = vunpack.c.l.b16 %v437
    %v470 = vunpack.c.l.b16 %v438
    %v471 = vunpack.c.l.b16 %v439
    %v472 = vunpack.c.l.b16 %v440
    %v473 = vunpack.c.l.b16 %v441
    %v474 = vunpack.c.l.b16 %v442
    %v475 = vunpack.c.l.b16 %v443
    %v476 = vunpack.c.l.b16 %v444
    %v477 = vunpack.c.l.b16 %v445
    %v478 = vunpack.c.l.b16 %v446
    %v479 = vpack.c.b16 %v464, %v463
    %v480 = vpack.c.b16 %v466, %v465
    %v481 = vpack.c.b16 %v468, %v467
    %v482 = vpack.c.b16 %v470, %v469
    %v483 = vpack.c.b16 %v472, %v471
    %v484 = vpack.c.b16 %v474, %v473
    %v485 = vpack.c.b16 %v476, %v475
    %v486 = vpack.c.b16 %v478, %v477
    %495 = vmatpush.bf16.msra.mxu0 %v486
    %496 = vmatpush.bf16.msra.mxu0 %v485
    %497 = vmatpush.bf16.msra.mxu0 %v484
    %498 = vmatpush.bf16.msra.mxu0 %v483
    %499 = vmatpush.bf16.msra.mxu0 %v482
    %500 = vmatpush.bf16.msra.mxu0 %v481
    %501 = vmatpush.bf16.msra.mxu0 %v480
    %502 = vmatpush.bf16.msra.mxu0 %v479
    %503 = vmatmul.bf16.gmra.mxu0 %v430
    %v504 = vpop.f32.mrf.mxu0
    %v505 = vadd.f32 0.0, %v504
    %v506 = vpop.f32.mrf.mxu0
    %v507 = vadd.f32 0.0, %v506
    %508 = vdwg.mxu0
    %v509 = vpack.c.bf16 %v507, %v505
    %510 = vmatpush.bf16.msra.mxu0 0
    %511 = vmatpush.bf16.msra.mxu0 0
    %512 = vmatpush.bf16.msra.mxu0 0
    %513 = vmatpush.bf16.msra.mxu0 0
    %514 = vmatpush.bf16.msra.mxu0 0
    %515 = vmatpush.bf16.msra.mxu0 0
    %516 = vmatpush.bf16.msra.mxu0 0
    %517 = vmatpush.bf16.msra.mxu0 %v509
    %518 = vmatmul.bf16.gmra.mxu0 %v209
    %v519 = vpop.f32.mrf.mxu0
    %v520 = vadd.f32 0.0, %v519
    %v521 = vpop.f32.mrf.mxu0
    %v522 = vadd.f32 0.0, %v521
    %523 = vdwg.mxu0
    %v524 = vld [vmem:[%s9] sm:$0x1]
    %v525 = vld [vmem:[%s10] sm:$0x1]
    %v526 = vadd.f32 %v520, %v522
    %v527 = vrot.slane %v526, 4
    %v528 = vadd.f32 %v526, %v527
    %v529 = vrot.slane %v528, 2
    %v530 = vadd.f32 %v528, %v529
    %v531 = vrot.slane %v530, 1
    %v532 = vadd.f32 %v530, %v531
    %v533 = vmul.f32 %v532, %v240
    %v534 = vmul.f32 %v520, %v520
    %v535 = vmul.f32 %v522, %v522
    %v536 = vadd.f32 %v534, %v535
    %v537 = vrot.slane %v536, 4
    %v538 = vadd.f32 %v536, %v537
    %v539 = vrot.slane %v538, 2
    %v540 = vadd.f32 %v538, %v539
    %v541 = vrot.slane %v540, 1
    %v542 = vadd.f32 %v540, %v541
    %v543 = vmul.f32 %v542, %v240
    %v544 = vmul.f32 %v533, %v533
    %v545 = vsub.f32 %v543, %v544
    %v546 = vmax.f32 %v545, 0.0
    %v547 = vsub.f32 %v520, %v533
    %v548 = vsub.f32 %v522, %v533
    %v549 = vadd.f32 %v546, 1e-05
    %v550 = vrsqrt.pop %v549
    %v551 = vmul.f32 %v550, %v549
    %v552 = vmul.f32 %v551, %v550
    %v553 = vmul.f32 0.5, %v552
    %v554 = vsub.f32 1.5, %v553
    %v555 = vmul.f32 %v550, %v554
    %vm556 = vweird.f32 %v549
    %vm557 = vweird.f32 %v550
    %vm558 = vmor %vm556, %vm557
    %v559 = vsel %vm558, %v550, %v555
    %v560 = vmul.f32 %v547, %v559
    %v561 = vmul.f32 %v548, %v559
    %v563 = vperm.slane %v524, 0
    %v565 = vmul.f32 %v560, %v563
    %v566 = vmul.f32 %v561, %v563
    %v568 = vperm.slane %v525, 0
    %v570 = vadd.f32 %v565, %v568
    %v571 = vadd.f32 %v566, %v568
    %v572 = vmax.f32 %v570, 0.0
    %v573 = vmax.f32 %v571, 0.0
    %v574 = vadd.f32 %v572, %v428
    %v575 = vadd.f32 %v573, %v429
    %v576 = vpack.c.bf16 %v575, %v574
    %v577 = vld [vmem:[%s11] sm:$0xf]
    %v578 = vld [vmem:[%s11 + $0x4] sm:$0xf]
    %v579 = vld [vmem:[%s11 + $0x8] sm:$0xf]
    %v580 = vld [vmem:[%s11 + $0xc] sm:$0xf]
    %v581 = vld [vmem:[%s11 + $0x10] sm:$0xf]
    %v582 = vld [vmem:[%s11 + $0x14] sm:$0xf]
    %v583 = vld [vmem:[%s11 + $0x18] sm:$0xf]
    %v584 = vld [vmem:[%s11 + $0x1c] sm:$0xf]
    %v585 = vld [vmem:[%s11 + $0x20] sm:$0xf]
    %v586 = vld [vmem:[%s11 + $0x24] sm:$0xf]
    %v587 = vld [vmem:[%s11 + $0x28] sm:$0xf]
    %v588 = vld [vmem:[%s11 + $0x2c] sm:$0xf]
    %v589 = vld [vmem:[%s11 + $0x30] sm:$0xf]
    %v590 = vld [vmem:[%s11 + $0x34] sm:$0xf]
    %v591 = vld [vmem:[%s11 + $0x38] sm:$0xf]
    %v592 = vld [vmem:[%s11 + $0x3c] sm:$0xf]
    %v609 = vunpack.c.l.b16 %v577
    %v610 = vunpack.c.l.b16 %v578
    %v611 = vunpack.c.l.b16 %v579
    %v612 = vunpack.c.l.b16 %v580
    %v613 = vunpack.c.l.b16 %v581
    %v614 = vunpack.c.l.b16 %v582
    %v615 = vunpack.c.l.b16 %v583
    %v616 = vunpack.c.l.b16 %v584
    %v617 = vunpack.c.l.b16 %v585
    %v618 = vunpack.c.l.b16 %v586
    %v619 = vunpack.c.l.b16 %v587
    %v620 = vunpack.c.l.b16 %v588
    %v621 = vunpack.c.l.b16 %v589
    %v622 = vunpack.c.l.b16 %v590
    %v623 = vunpack.c.l.b16 %v591
    %v624 = vunpack.c.l.b16 %v592
    %v625 = vpack.c.b16 %v610, %v609
    %v626 = vpack.c.b16 %v612, %v611
    %v627 = vpack.c.b16 %v614, %v613
    %v628 = vpack.c.b16 %v616, %v615
    %v629 = vpack.c.b16 %v618, %v617
    %v630 = vpack.c.b16 %v620, %v619
    %v631 = vpack.c.b16 %v622, %v621
    %v632 = vpack.c.b16 %v624, %v623
    %641 = vmatpush.bf16.msra.mxu0 %v632
    %642 = vmatpush.bf16.msra.mxu0 %v631
    %643 = vmatpush.bf16.msra.mxu0 %v630
    %644 = vmatpush.bf16.msra.mxu0 %v629
    %645 = vmatpush.bf16.msra.mxu0 %v628
    %646 = vmatpush.bf16.msra.mxu0 %v627
    %647 = vmatpush.bf16.msra.mxu0 %v626
    %648 = vmatpush.bf16.msra.mxu0 %v625
    %649 = vmatmul.bf16.gmra.mxu0 %v576
    %v650 = vpop.f32.mrf.mxu0
    %v651 = vadd.f32 0.0, %v650
    %v652 = vpop.f32.mrf.mxu0
    %v653 = vadd.f32 0.0, %v652
    %654 = vdwg.mxu0
    %v655 = vpack.c.bf16 %v653, %v651
    %v656 = vld [vmem:[%s13] sm:$0x1]
    %v658 = vperm.slane %v656, 0
    %v660 = vmul.f32 %v651, %v658
    %v661 = vmul.f32 %v653, %v658
    %662 = vadd.xlane.f32.xlu0 %v660
    %v663 = vpop.xlane.xlu0 %662
    %664 = vadd.xlane.f32.xlu0 %v661
    %v665 = vpop.xlane.xlu0 %664
    %vm666 = vcmask 7168
    %667 = vst.msk [vmem:[#allocation4] sm:$0xff] %vm666, %v663
    %668 = vst.msk [vmem:[#allocation4 + $0x8] sm:$0xff] %vm666, %v665
    %v669 = vld [vmem:[%s12] sm:$0x1]
    %v671 = vperm.slane %v669, 0
    %v673 = vmul.f32 %v651, %v671
    %v674 = vmul.f32 %v653, %v671
    %675 = vadd.xlane.f32.xlu0 %v673
    %v676 = vpop.xlane.xlu0 %675
    %677 = vadd.xlane.f32.xlu0 %v674
    %v678 = vpop.xlane.xlu0 %677
    %679 = vxpose.xlu0.b32.start [1/16] %v676, 128
    %680 = vxpose.xlu0.b32.cont [2/16] %v678, 128
    %681 = vxpose.xlu0.b32.cont [3/16] 0.0, 128
    %682 = vxpose.xlu0.b32.cont [4/16] 0.0, 128
    %683 = vxpose.xlu0.b32.cont [5/16] 0.0, 128
    %684 = vxpose.xlu0.b32.cont [6/16] 0.0, 128
    %685 = vxpose.xlu0.b32.cont [7/16] 0.0, 128
    %686 = vxpose.xlu0.b32.cont [8/16] 0.0, 128
    %687 = vxpose.xlu0.b32.cont [9/16] 0.0, 128
    %688 = vxpose.xlu0.b32.cont [10/16] 0.0, 128
    %689 = vxpose.xlu0.b32.cont [11/16] 0.0, 128
    %690 = vxpose.xlu0.b32.cont [12/16] 0.0, 128
    %691 = vxpose.xlu0.b32.cont [13/16] 0.0, 128
    %692 = vxpose.xlu0.b32.cont [14/16] 0.0, 128
    %693 = vxpose.xlu0.b32.cont [15/16] 0.0, 128
    %694 = vxpose.xlu0.b32.end [16/16] 0.0, 128
    %v695 = vpop.trf.xlu0
    %v696 = vpop.trf.xlu0
    %v697 = vpop.trf.xlu0
    %v698 = vpop.trf.xlu0
    %v699 = vpop.trf.xlu0
    %v700 = vpop.trf.xlu0
    %v701 = vpop.trf.xlu0
    %v702 = vpop.trf.xlu0
    %v703 = vpop.trf.xlu0
    %v704 = vpop.trf.xlu0
    %v705 = vpop.trf.xlu0
    %v706 = vpop.trf.xlu0
    %v707 = vpop.trf.xlu0
    %v708 = vpop.trf.xlu0
    %v709 = vpop.trf.xlu0
    %v710 = vpop.trf.xlu0
    %v711 = vld [vmem:[#allocation4] sm:$0xff]
    %v712 = vld [vmem:[#allocation4 + $0x8] sm:$0xff]
    %714 = vset.pattern.permute.xlu0 0
    %715 = vperm.xlu0 %714, %v711
    %v716 = vpop.permute.xlu0 %715
    %719 = vset.pattern.permute.xlu0 0
    %720 = vperm.xlu0 %719, %v712
    %v721 = vpop.permute.xlu0 %720
    %v723 = vperm.slane %v695, 0
    %v724 = vadd.f32 %v716, %v723
    %v725 = vadd.f32 %v721, %v723
    %v726 = vmul.f32 %v724, 0.2
    %v727 = vmul.f32 %v725, 0.2
    %v728 = vmax.f32 %v724, %v726
    %v729 = vmax.f32 %v725, %v727
    %v730 = vld [vmem:[#allocation2] sm:$0xf]
    %v731 = vld [vmem:[#allocation2 + $0x4] sm:$0xf]
    %v732 = vunpack.c.l.bf16 %v730
    %v733 = vunpack.c.l.bf16 %v731
    %vm734 = vcmp.gt.f32.partialorder %v732, 0.0
    %vm735 = vcmp.gt.f32.partialorder %v733, 0.0
    %v736 = vsel %vm734, %v728, -1e+30
    %v737 = vsel %vm735, %v729, -1e+30
    %v738 = vsel %vm207, %v736, -inf
    %739 = vmax.xlane.f32.xlu0 %v738
    %v740 = vpop.xlane.xlu0 %739
    %v741 = vsel %vm207, %v737, -inf
    %742 = vmax.xlane.f32.xlu0 %v741
    %v743 = vpop.xlane.xlu0 %742
    %v744 = vsub.f32 %v736, %v740
    %v745 = vsub.f32 %v737, %v743
    %v746 = vpack.c.bf16 %v744, %v744
    %v747 = vpack.c.bf16 %v745, %v745
    %v748 = vunpack.c.l.bf16 %v746
    %v749 = vunpack.c.l.bf16 %v747
    %v750 = vmul.f32 %v748, 1.442695
    %v751 = vpow.pop %v750
    %v752 = vmul.f32 %v749, 1.442695
    %v753 = vpow.pop %v752
    %v754 = vpack.c.bf16 %v751, %v751
    %v755 = vpack.c.bf16 %v753, %v753
    %v756 = vunpack.c.l.bf16 %v754
    %v757 = vunpack.c.l.bf16 %v755
    %v758 = vsel %vm207, %v756, 0.0
    %759 = vadd.xlane.f32.xlu0 %v758
    %v760 = vpop.xlane.xlu0 %759
    %v761 = vsel %vm207, %v757, 0.0
    %762 = vadd.xlane.f32.xlu0 %v761
    %v763 = vpop.xlane.xlu0 %762
    %v764 = vrcp.pop %v760
    %v765 = vrcp.pop %v763
    %v766 = vpack.c.bf16 %v764, %v764
    %v767 = vpack.c.bf16 %v765, %v765
    %v768 = vunpack.c.l.bf16 %v766
    %v769 = vunpack.c.l.bf16 %v767
    %v770 = vmul.f32 %v756, %v768
    %v771 = vmul.f32 %v757, %v769
    %v772 = vpack.c.bf16 %v771, %v770
    %v774 = vsel %vm207, %v772, 0
    %776 = vmatpush.bf16.msra.mxu0 0
    %777 = vmatpush.bf16.msra.mxu0 0
    %778 = vmatpush.bf16.msra.mxu0 0
    %779 = vmatpush.bf16.msra.mxu0 0
    %780 = vmatpush.bf16.msra.mxu0 0
    %781 = vmatpush.bf16.msra.mxu0 0
    %782 = vmatpush.bf16.msra.mxu0 0
    %783 = vmatpush.bf16.msra.mxu0 %v655
    %784 = vmatmul.bf16.gmra.mxu0 %v774
    %v785 = vpop.f32.mrf.mxu0
    %v786 = vadd.f32 0.0, %v785
    %v787 = vpop.f32.mrf.mxu0
    %v788 = vadd.f32 0.0, %v787
    %789 = vdwg.mxu0
    %790 = vst [vmem:[#allocation5] sm:$0xff] %v786
    %791 = vst [vmem:[#allocation5 + $0x8] sm:$0xff] %v788
    %v792 = vld [vmem:[#allocation5] sm:$0xff]
    %v793 = vld [vmem:[#allocation5 + $0x8] sm:$0xff]
    %v794 = vld [vmem:[%s14] sm:$0x1]
    %v795 = vld [vmem:[%s15] sm:$0x1]
    %v796 = vadd.f32 %v792, %v793
    %v797 = vrot.slane %v796, 4
    %v798 = vadd.f32 %v796, %v797
    %v799 = vrot.slane %v798, 2
    %v800 = vadd.f32 %v798, %v799
    %v801 = vrot.slane %v800, 1
    %v802 = vadd.f32 %v800, %v801
    %v803 = vmul.f32 %v802, %v240
    %v804 = vmul.f32 %v792, %v792
    %v805 = vmul.f32 %v793, %v793
    %v806 = vadd.f32 %v804, %v805
    %v807 = vrot.slane %v806, 4
    %v808 = vadd.f32 %v806, %v807
    %v809 = vrot.slane %v808, 2
    %v810 = vadd.f32 %v808, %v809
    %v811 = vrot.slane %v810, 1
    %v812 = vadd.f32 %v810, %v811
    %v813 = vmul.f32 %v812, %v240
    %v814 = vmul.f32 %v803, %v803
    %v815 = vsub.f32 %v813, %v814
    %v816 = vmax.f32 %v815, 0.0
    %v817 = vsub.f32 %v792, %v803
    %v818 = vsub.f32 %v793, %v803
    %v819 = vadd.f32 %v816, 1e-05
    %v820 = vrsqrt.pop %v819
    %v821 = vmul.f32 %v820, %v819
    %v822 = vmul.f32 %v821, %v820
    %v823 = vmul.f32 0.5, %v822
    %v824 = vsub.f32 1.5, %v823
    %v825 = vmul.f32 %v820, %v824
    %vm826 = vweird.f32 %v819
    %vm827 = vweird.f32 %v820
    %vm828 = vmor %vm826, %vm827
    %v829 = vsel %vm828, %v820, %v825
    %v830 = vmul.f32 %v817, %v829
    %v831 = vmul.f32 %v818, %v829
    %v833 = vperm.slane %v794, 0
    %v835 = vmul.f32 %v830, %v833
    %v836 = vmul.f32 %v831, %v833
    %v838 = vperm.slane %v795, 0
    %v840 = vadd.f32 %v835, %v838
    %v841 = vadd.f32 %v836, %v838
    %v842 = vmax.f32 %v840, 0.0
    %v843 = vmax.f32 %v841, 0.0
    %v844 = vadd.f32 %v842, %v574
    %v845 = vadd.f32 %v843, %v575
    %v846 = vld [vmem:[%s16] sm:$0x1]
    %v847 = vpack.c.bf16 %v845, %v844
    %v849 = vsel %vm207, %v846, 0
    %851 = vmatpush.bf16.msra.mxu0 0
    %852 = vmatpush.bf16.msra.mxu0 0
    %853 = vmatpush.bf16.msra.mxu0 0
    %854 = vmatpush.bf16.msra.mxu0 0
    %855 = vmatpush.bf16.msra.mxu0 0
    %856 = vmatpush.bf16.msra.mxu0 0
    %857 = vmatpush.bf16.msra.mxu0 0
    %858 = vmatpush.bf16.msra.mxu0 %v847
    %859 = vmatmul.bf16.gmra.mxu0 %v849
    %v860 = vpop.f32.mrf.mxu0
    %v861 = vadd.f32 0.0, %v860
    %v862 = vpop.f32.mrf.mxu0
    %863 = vdwg.mxu0
    %v864 = vpack.c.bf16 %v861, %v861
    %v865 = vld [vmem:[%s17] sm:$0xf]
    %v866 = vld [vmem:[%s17 + $0x4] sm:$0xf]
    %v867 = vld [vmem:[%s17 + $0x8] sm:$0xf]
    %v868 = vld [vmem:[%s17 + $0xc] sm:$0xf]
    %v869 = vld [vmem:[%s17 + $0x10] sm:$0xf]
    %v870 = vld [vmem:[%s17 + $0x14] sm:$0xf]
    %v871 = vld [vmem:[%s17 + $0x18] sm:$0xf]
    %v872 = vld [vmem:[%s17 + $0x1c] sm:$0xf]
    %v873 = vld [vmem:[%s17 + $0x20] sm:$0xf]
    %v874 = vld [vmem:[%s17 + $0x24] sm:$0xf]
    %v875 = vld [vmem:[%s17 + $0x28] sm:$0xf]
    %v876 = vld [vmem:[%s17 + $0x2c] sm:$0xf]
    %v877 = vld [vmem:[%s17 + $0x30] sm:$0xf]
    %v878 = vld [vmem:[%s17 + $0x34] sm:$0xf]
    %v879 = vld [vmem:[%s17 + $0x38] sm:$0xf]
    %v880 = vld [vmem:[%s17 + $0x3c] sm:$0xf]
    %v881 = vld [vmem:[%s18] sm:$0x1]
    %v883 = vperm.slane %v881, 0
    %v901 = vunpack.c.l.b16 %v865
    %v902 = vunpack.c.l.b16 %v866
    %v903 = vunpack.c.l.b16 %v867
    %v904 = vunpack.c.l.b16 %v868
    %v905 = vunpack.c.l.b16 %v869
    %v906 = vunpack.c.l.b16 %v870
    %v907 = vunpack.c.l.b16 %v871
    %v908 = vunpack.c.l.b16 %v872
    %v909 = vunpack.c.l.b16 %v873
    %v910 = vunpack.c.l.b16 %v874
    %v911 = vunpack.c.l.b16 %v875
    %v912 = vunpack.c.l.b16 %v876
    %v913 = vunpack.c.l.b16 %v877
    %v914 = vunpack.c.l.b16 %v878
    %v915 = vunpack.c.l.b16 %v879
    %v916 = vunpack.c.l.b16 %v880
    %v917 = vpack.c.b16 %v902, %v901
    %v918 = vpack.c.b16 %v904, %v903
    %v919 = vpack.c.b16 %v906, %v905
    %v920 = vpack.c.b16 %v908, %v907
    %v921 = vpack.c.b16 %v910, %v909
    %v922 = vpack.c.b16 %v912, %v911
    %v923 = vpack.c.b16 %v914, %v913
    %v924 = vpack.c.b16 %v916, %v915
    %933 = vmatpush.bf16.msra.mxu0 %v924
    %934 = vmatpush.bf16.msra.mxu0 %v923
    %935 = vmatpush.bf16.msra.mxu0 %v922
    %936 = vmatpush.bf16.msra.mxu0 %v921
    %937 = vmatpush.bf16.msra.mxu0 %v920
    %938 = vmatpush.bf16.msra.mxu0 %v919
    %939 = vmatpush.bf16.msra.mxu0 %v918
    %940 = vmatpush.bf16.msra.mxu0 %v917
    %941 = vmatmul.bf16.gmra.mxu0 %v864
    %v942 = vpop.f32.mrf.mxu0
    %v943 = vadd.f32 %v883, %v942
    %v944 = vpop.f32.mrf.mxu0
    %945 = vdwg.mxu0
    %v946 = vmax.f32 %v943, 0.0
    %v947 = vpack.c.bf16 %v946, %v946
    %v948 = vld [vmem:[%s19] sm:$0xf]
    %v949 = vld [vmem:[%s19 + $0x4] sm:$0xf]
    %v950 = vld [vmem:[%s19 + $0x8] sm:$0xf]
    %v951 = vld [vmem:[%s19 + $0xc] sm:$0xf]
    %v952 = vld [vmem:[%s19 + $0x10] sm:$0xf]
    %v953 = vld [vmem:[%s19 + $0x14] sm:$0xf]
    %v954 = vld [vmem:[%s19 + $0x18] sm:$0xf]
    %v955 = vld [vmem:[%s19 + $0x1c] sm:$0xf]
    %v956 = vld [vmem:[%s19 + $0x20] sm:$0xf]
    %v957 = vld [vmem:[%s19 + $0x24] sm:$0xf]
    %v958 = vld [vmem:[%s19 + $0x28] sm:$0xf]
    %v959 = vld [vmem:[%s19 + $0x2c] sm:$0xf]
    %v960 = vld [vmem:[%s19 + $0x30] sm:$0xf]
    %v961 = vld [vmem:[%s19 + $0x34] sm:$0xf]
    %v962 = vld [vmem:[%s19 + $0x38] sm:$0xf]
    %v963 = vld [vmem:[%s19 + $0x3c] sm:$0xf]
    %v964 = vld [vmem:[%s20] sm:$0x1]
    %v966 = vperm.slane %v964, 0
    %v984 = vunpack.c.l.b16 %v948
    %v985 = vunpack.c.l.b16 %v949
    %v986 = vunpack.c.l.b16 %v950
    %v987 = vunpack.c.l.b16 %v951
    %v988 = vunpack.c.l.b16 %v952
    %v989 = vunpack.c.l.b16 %v953
    %v990 = vunpack.c.l.b16 %v954
    %v991 = vunpack.c.l.b16 %v955
    %v992 = vunpack.c.l.b16 %v956
    %v993 = vunpack.c.l.b16 %v957
    %v994 = vunpack.c.l.b16 %v958
    %v995 = vunpack.c.l.b16 %v959
    %v996 = vunpack.c.l.b16 %v960
    %v997 = vunpack.c.l.b16 %v961
    %v998 = vunpack.c.l.b16 %v962
    %v999 = vunpack.c.l.b16 %v963
    %v1000 = vpack.c.b16 %v985, %v984
    %v1001 = vpack.c.b16 %v987, %v986
    %v1002 = vpack.c.b16 %v989, %v988
    %v1003 = vpack.c.b16 %v991, %v990
    %v1004 = vpack.c.b16 %v993, %v992
    %v1005 = vpack.c.b16 %v995, %v994
    %v1006 = vpack.c.b16 %v997, %v996
    %v1007 = vpack.c.b16 %v999, %v998
    %1016 = vmatpush.bf16.msra.mxu0 %v1007
    %1017 = vmatpush.bf16.msra.mxu0 %v1006
    %1018 = vmatpush.bf16.msra.mxu0 %v1005
    %1019 = vmatpush.bf16.msra.mxu0 %v1004
    %1020 = vmatpush.bf16.msra.mxu0 %v1003
    %1021 = vmatpush.bf16.msra.mxu0 %v1002
    %1022 = vmatpush.bf16.msra.mxu0 %v1001
    %1023 = vmatpush.bf16.msra.mxu0 %v1000
    %1024 = vmatmul.bf16.gmra.mxu0 %v947
    %v1025 = vpop.f32.mrf.mxu0
    %v1026 = vadd.f32 %v966, %v1025
    %v1027 = vpop.f32.mrf.mxu0
    %1028 = vdwg.mxu0
    %v1029 = vmax.f32 %v1026, 0.0
    %v1030 = vpack.c.bf16 %v1029, %v1029
    %v1031 = vld [vmem:[%s21] sm:$0xf]
    %v1032 = vld [vmem:[%s21 + $0x4] sm:$0xf]
    %v1033 = vld [vmem:[%s21 + $0x8] sm:$0xf]
    %v1034 = vld [vmem:[%s21 + $0xc] sm:$0xf]
    %v1035 = vld [vmem:[%s21 + $0x10] sm:$0xf]
    %v1036 = vld [vmem:[%s21 + $0x14] sm:$0xf]
    %v1037 = vld [vmem:[%s21 + $0x18] sm:$0xf]
    %v1038 = vld [vmem:[%s21 + $0x1c] sm:$0xf]
    %v1039 = vld [vmem:[%s21 + $0x20] sm:$0xf]
    %v1040 = vld [vmem:[%s21 + $0x24] sm:$0xf]
    %v1041 = vld [vmem:[%s21 + $0x28] sm:$0xf]
    %v1042 = vld [vmem:[%s21 + $0x2c] sm:$0xf]
    %v1043 = vld [vmem:[%s21 + $0x30] sm:$0xf]
    %v1044 = vld [vmem:[%s21 + $0x34] sm:$0xf]
    %v1045 = vld [vmem:[%s21 + $0x38] sm:$0xf]
    %v1046 = vld [vmem:[%s21 + $0x3c] sm:$0xf]
    %v1047 = vld [vmem:[%s22] sm:$0x1]
    %v1049 = vperm.slane %v1047, 0
    %v1067 = vunpack.c.l.b16 %v1031
    %v1068 = vunpack.c.l.b16 %v1032
    %v1069 = vunpack.c.l.b16 %v1033
    %v1070 = vunpack.c.l.b16 %v1034
    %v1071 = vunpack.c.l.b16 %v1035
    %v1072 = vunpack.c.l.b16 %v1036
    %v1073 = vunpack.c.l.b16 %v1037
    %v1074 = vunpack.c.l.b16 %v1038
    %v1075 = vunpack.c.l.b16 %v1039
    %v1076 = vunpack.c.l.b16 %v1040
    %v1077 = vunpack.c.l.b16 %v1041
    %v1078 = vunpack.c.l.b16 %v1042
    %v1079 = vunpack.c.l.b16 %v1043
    %v1080 = vunpack.c.l.b16 %v1044
    %v1081 = vunpack.c.l.b16 %v1045
    %v1082 = vunpack.c.l.b16 %v1046
    %v1083 = vpack.c.b16 %v1068, %v1067
    %v1084 = vpack.c.b16 %v1070, %v1069
    %v1085 = vpack.c.b16 %v1072, %v1071
    %v1086 = vpack.c.b16 %v1074, %v1073
    %v1087 = vpack.c.b16 %v1076, %v1075
    %v1088 = vpack.c.b16 %v1078, %v1077
    %v1089 = vpack.c.b16 %v1080, %v1079
    %v1090 = vpack.c.b16 %v1082, %v1081
    %1099 = vmatpush.bf16.msra.mxu0 %v1090
    %1100 = vmatpush.bf16.msra.mxu0 %v1089
    %1101 = vmatpush.bf16.msra.mxu0 %v1088
    %1102 = vmatpush.bf16.msra.mxu0 %v1087
    %1103 = vmatpush.bf16.msra.mxu0 %v1086
    %1104 = vmatpush.bf16.msra.mxu0 %v1085
    %1105 = vmatpush.bf16.msra.mxu0 %v1084
    %1106 = vmatpush.bf16.msra.mxu0 %v1083
    %1107 = vmatmul.bf16.gmra.mxu0 %v1030
    %v1108 = vpop.f32.mrf.mxu0
    %v1109 = vadd.f32 %v1049, %v1108
    %v1110 = vpop.f32.mrf.mxu0
    %1111 = vdwg.mxu0
    %v1112 = vmax.f32 %v1109, 0.0
    %v1113 = vpack.c.bf16 %v1112, %v1112
    %v1114 = vld [vmem:[%s23] sm:$0xf]
    %v1115 = vld [vmem:[%s23 + $0x4] sm:$0xf]
    %v1116 = vld [vmem:[%s23 + $0x8] sm:$0xf]
    %v1117 = vld [vmem:[%s23 + $0xc] sm:$0xf]
    %v1118 = vld [vmem:[%s23 + $0x10] sm:$0xf]
    %v1119 = vld [vmem:[%s23 + $0x14] sm:$0xf]
    %v1120 = vld [vmem:[%s23 + $0x18] sm:$0xf]
    %v1121 = vld [vmem:[%s23 + $0x1c] sm:$0xf]
    %v1122 = vld [vmem:[%s23 + $0x20] sm:$0xf]
    %v1123 = vld [vmem:[%s23 + $0x24] sm:$0xf]
    %v1124 = vld [vmem:[%s23 + $0x28] sm:$0xf]
    %v1125 = vld [vmem:[%s23 + $0x2c] sm:$0xf]
    %v1126 = vld [vmem:[%s23 + $0x30] sm:$0xf]
    %v1127 = vld [vmem:[%s23 + $0x34] sm:$0xf]
    %v1128 = vld [vmem:[%s23 + $0x38] sm:$0xf]
    %v1129 = vld [vmem:[%s23 + $0x3c] sm:$0xf]
    %v1130 = vld [vmem:[%s24] sm:$0x1]
    %v1132 = vperm.slane %v1130, 0
    %v1150 = vunpack.c.l.b16 %v1114
    %v1151 = vunpack.c.l.b16 %v1115
    %v1152 = vunpack.c.l.b16 %v1116
    %v1153 = vunpack.c.l.b16 %v1117
    %v1154 = vunpack.c.l.b16 %v1118
    %v1155 = vunpack.c.l.b16 %v1119
    %v1156 = vunpack.c.l.b16 %v1120
    %v1157 = vunpack.c.l.b16 %v1121
    %v1158 = vunpack.c.l.b16 %v1122
    %v1159 = vunpack.c.l.b16 %v1123
    %v1160 = vunpack.c.l.b16 %v1124
    %v1161 = vunpack.c.l.b16 %v1125
    %v1162 = vunpack.c.l.b16 %v1126
    %v1163 = vunpack.c.l.b16 %v1127
    %v1164 = vunpack.c.l.b16 %v1128
    %v1165 = vunpack.c.l.b16 %v1129
    %v1166 = vpack.c.b16 %v1151, %v1150
    %v1167 = vpack.c.b16 %v1153, %v1152
    %v1168 = vpack.c.b16 %v1155, %v1154
    %v1169 = vpack.c.b16 %v1157, %v1156
    %v1170 = vpack.c.b16 %v1159, %v1158
    %v1171 = vpack.c.b16 %v1161, %v1160
    %v1172 = vpack.c.b16 %v1163, %v1162
    %v1173 = vpack.c.b16 %v1165, %v1164
    %1182 = vmatpush.bf16.msra.mxu0 %v1173
    %1183 = vmatpush.bf16.msra.mxu0 %v1172
    %1184 = vmatpush.bf16.msra.mxu0 %v1171
    %1185 = vmatpush.bf16.msra.mxu0 %v1170
    %1186 = vmatpush.bf16.msra.mxu0 %v1169
    %1187 = vmatpush.bf16.msra.mxu0 %v1168
    %1188 = vmatpush.bf16.msra.mxu0 %v1167
    %1189 = vmatpush.bf16.msra.mxu0 %v1166
    %1190 = vmatmul.bf16.gmra.mxu0 %v1113
    %v1191 = vpop.f32.mrf.mxu0
    %v1192 = vadd.f32 %v1132, %v1191
    %v1193 = vpop.f32.mrf.mxu0
    %1194 = vdwg.mxu0
    %1195 = vst [vmem:[#allocation6] sm:$0x3] %v1192
    // Predicated region
    $region132: #{graph_encoder_one_head.1} parent=1 // pred_check
      _
    $region133: #{graph_encoder_one_head.1} parent=1 // pred_check_branch
      %1197 = sbr.rel (0) target = $region135
    $region134: #{graph_encoder_one_head.1} parent=1 // pred_region
      %1199 = vsyncadd [#allocation7], 0
      %s1201 = sshll.u32 [#allocation6], 4
      %s1202 = int_to_ptr.vmem [resolvable:$true] %s1201
      %s1203 = sshll.u32 %s25, 4
      %s1204 = int_to_ptr.hbm [resolvable:$true] %s1203
      %1206 = dma.vmem_to_hbm [thread:$0]  %s1202, 32, %s1204, [#allocation7]
    $region135: #{graph_encoder_one_head.1} parent=1 // pred_fallthru
      _
    // Predicated region
    $region136: #{graph_encoder_one_head.1} parent=1 // pred_check
      _
    $region137: #{graph_encoder_one_head.1} parent=1 // pred_check_branch
      %1208 = sbr.rel (0) target = $region139
    $region138: #{graph_encoder_one_head.1} parent=1 // pred_region
      %1210 = dma.done [#allocation7], 32
    $region139: #{graph_encoder_one_head.1} parent=1 // pred_fallthru
      _
    %1211 = vsyncpa [#allocation7], 1
  %1212 = vsyncmov [#allocation3]
  %s1213 = vpop.sfrf %1212
  %p1214 = scmp.eq.s32.totalorder %s1213, 0
  %p1215 = pneg %p1214
  %1217 = shalt.err (%p1215)

</llo_original>
